<compile_context>
chip_gen: v6e
topology: v6e:2x2x1
jax: 0.10.0
libtpu: 0.0.40
codegen_flags: <defaults>
</compile_context>

<pallas_src>
import functools

import jax
import jax.numpy as jnp
from jax import lax
from jax.experimental import pallas as pl
from jax.experimental.pallas import tpu as pltpu


def lstm_proj_kernel(xf_ref, wih_ref, whh_ref, b_ref, wproj_ref, bproj_ref,
                     o_ref, gx_scr, h_all_scr, *, seq_len, batch):
    """Fused LSTM recurrence + output projection (time-major, flattened rows).

    xf_ref:    [L*Bp, d_model]     bf16 inputs, row t*Bp+b is (timestep t, seq b)
    wih_ref:   [d_model, 4*d_rnn]  bf16 W_ih^T (gate order i, f, o, g)
    whh_ref:   [d_rnn,   4*d_rnn]  bf16 W_hh^T (gate order i, f, o, g)
    b_ref:     [1, 4*d_rnn]        f32 b_ih + b_hh (permuted)
    wproj_ref: [d_rnn, d_out_pad]  bf16 W_proj^T zero-padded to 128 lanes
    bproj_ref: [1, d_out_pad]      f32 bias zero-padded to 128 lanes
    o_ref:     [L*Bp, d_out_pad]   f32 projected LSTM outputs
    gx_scr:    [L*Bp, 4*d_rnn]     f32 VMEM scratch: precomputed input gates
    h_all_scr: [L*Bp, d_rnn]       bf16 VMEM scratch: hidden state per timestep
    """
    d_rnn = whh_ref.shape[0]

    # (1) All input-to-hidden gates in a single bf16 MXU call; bias folded once.
    gx_scr[...] = (jnp.dot(xf_ref[...], wih_ref[...],
                           preferred_element_type=jnp.float32)
                   + b_ref[...])                                  # [L*Bp, 4*d_rnn]

    # (2) Recurrence, fully unrolled (seq_len is small & static); h/c carried
    #     as f32 vregs.  W_hh streams from VMEM every step (bf16) instead of
    #     being hoisted into a 256 KiB live value.
    # TODO(synk): for non-toy L, replace the Python unroll with
    # lax.fori_loop(..., unroll=4..8) to bound live ranges; optionally keep
    # W_hh resident in MXU staging via pltpu.matmul_push_rhs/_acc_lhs/_pop.
    h = jnp.zeros((batch, d_rnn), jnp.float32)
    c = jnp.zeros((batch, d_rnn), jnp.float32)
    for t in range(seq_len):
        row = t * batch                        # batch padded to 8 -> aligned start
        gates = gx_scr[pl.ds(row, batch), :] + jnp.dot(
            h.astype(jnp.bfloat16), whh_ref[...],
            preferred_element_type=jnp.float32)                   # [Bp, 4*d_rnn]
        # gate order (i, f, o, g): one contiguous sigmoid slab, one tanh slab.
        sig = jax.nn.sigmoid(gates[:, :3 * d_rnn])
        g_g = jnp.tanh(gates[:, 3 * d_rnn:])
        i_g = sig[:, :d_rnn]
        f_g = sig[:, d_rnn:2 * d_rnn]
        o_g = sig[:, 2 * d_rnn:3 * d_rnn]
        c = f_g * c + i_g * g_g
        h = o_g * jnp.tanh(c)
        h_all_scr[pl.ds(row, batch), :] = h.astype(jnp.bfloat16)  # lane-dense, aligned

    # (3) Single lane-dense (128-padded) output projection + single store.
    o_ref[...] = (jnp.dot(h_all_scr[...], wproj_ref[...],
                          preferred_element_type=jnp.float32)
                  + bproj_ref[...])


def rnn_layers_forward(data, non_pad_mask, packed):
    """RNN_layers.forward equivalent: masked LSTM + projection, batch_first I/O.

    NOTE: pad_packed_sequence pads to max(lengths); as in the calling code the
    batch is assumed to contain at least one full-length sequence, so the
    output keeps shape [B, L, d_model].  Trailing padding only (as produced by
    pack_padded_sequence) is assumed.
    """
    B, L, d_model = data.shape
    d_rnn = packed["w_hh_T"].shape[0]
    d_out_pad = packed["w_proj_T"].shape[1]

    # Pad batch to a sublane multiple so all per-step accesses are aligned,
    # cast to bf16 before the (HBM read+write) transpose to halve that traffic.
    Bp = ((B + 7) // 8) * 8
    x = data.astype(jnp.bfloat16)
    if Bp != B:
        x = jnp.pad(x, ((0, Bp - B), (0, 0), (0, 0)))
    xf = jnp.transpose(x, (1, 0, 2)).reshape(L * Bp, d_model)     # time-major rows

    vmem = pl.BlockSpec(memory_space=pltpu.MemorySpace.VMEM)
    kernel = functools.partial(lstm_proj_kernel, seq_len=L, batch=Bp)

    # TODO(synk): at production sizes add a batch grid axis with
    # dimension_semantics=("parallel",) (2 TensorCores on v7x) and time-chunk
    # the gx matmul (gx_scr is 2 KiB/row in bf16-in/f32-out) instead of keeping
    # it fully resident; everything fits VMEM at these toy shapes.
    out_flat = pl.pallas_call(
        kernel,
        out_shape=jax.ShapeDtypeStruct((L * Bp, d_out_pad), jnp.float32),
        in_specs=[vmem] * 6,
        out_specs=vmem,
        scratch_shapes=[pltpu.VMEM((L * Bp, 4 * d_rnn), jnp.float32),
                        pltpu.VMEM((L * Bp, d_rnn), jnp.bfloat16)],
        compiler_params=pltpu.CompilerParams(vmem_limit_bytes=64 << 20),
    )(xf, packed["w_ih_T"], packed["w_hh_T"], packed["b"],
      packed["w_proj_T"], packed["b_proj"])

    out = out_flat.reshape(L, Bp, d_out_pad)[:, :B, :d_model]     # drop pads
    out = jnp.transpose(out, (1, 0, 2))                           # [B, L, d_model]

    # pack_padded/pad_packed semantics: LSTM output is exactly 0 at (trailing)
    # padded steps, so the Linear maps those positions to its bias.
    return jnp.where(non_pad_mask > 0, out, packed["b_proj"][:, :d_model])


def rnn_layers_reference(data, non_pad_mask, raw):
    """Pure-JAX f32 reference with explicit pack/pad semantics (state frozen at pads)."""
    B, L, d_model = data.shape
    d_rnn = raw["w_hh"].shape[1]
    x = jnp.transpose(data, (1, 0, 2)).astype(jnp.float32)          # [L, B, d_model]
    m = jnp.transpose(non_pad_mask, (1, 0, 2)).astype(jnp.float32)  # [L, B, 1]
    w_ih_T = raw["w_ih"].T
    w_hh_T = raw["w_hh"].T
    b = (raw["b_ih"] + raw["b_hh"])[None, :]

    def step(carry, inp):
        h, c = carry
        x_t, m_t = inp
        gates = x_t @ w_ih_T + h @ w_hh_T + b
        # PyTorch gate order: i, f, g, o
        i_g = jax.nn.sigmoid(gates[:, 0:d_rnn])
        f_g = jax.nn.sigmoid(gates[:, d_rnn:2 * d_rnn])
        g_g = jnp.tanh(gates[:, 2 * d_rnn:3 * d_rnn])
        o_g = jax.nn.sigmoid(gates[:, 3 * d_rnn:4 * d_rnn])
        c_new = f_g * c + i_g * g_g
        h_new = o_g * jnp.tanh(c_new)
        c = m_t * c_new + (1.0 - m_t) * c
        h = m_t * h_new + (1.0 - m_t) * h
        return (h, c), h * m_t

    init = (jnp.zeros((B, d_rnn), jnp.float32), jnp.zeros((B, d_rnn), jnp.float32))
    _, hs = lax.scan(step, init, (x, m))                            # [L, B, d_rnn]
    out = hs @ raw["w_proj"].T + raw["b_proj"][None, :]             # [L, B, d_model]
    return jnp.transpose(out, (1, 0, 2))


def init_params(key, d_model, d_rnn):
    """PyTorch-style uniform(-1/sqrt(d_rnn), 1/sqrt(d_rnn)) LSTM / Linear params (f32)."""
    ks = jax.random.split(key, 6)
    k = 1.0 / jnp.sqrt(jnp.float32(d_rnn))
    return {
        "w_ih": jax.random.uniform(ks[0], (4 * d_rnn, d_model), jnp.float32, -k, k),
        "w_hh": jax.random.uniform(ks[1], (4 * d_rnn, d_rnn), jnp.float32, -k, k),
        "b_ih": jax.random.uniform(ks[2], (4 * d_rnn,), jnp.float32, -k, k),
        "b_hh": jax.random.uniform(ks[3], (4 * d_rnn,), jnp.float32, -k, k),
        "w_proj": jax.random.uniform(ks[4], (d_model, d_rnn), jnp.float32, -k, k),
        "b_proj": jax.random.uniform(ks[5], (d_model,), jnp.float32, -k, k),
    }


def pack_params(raw, d_model, d_rnn, lane=128):
    """Kernel-ready params: gates permuted (i,f,g,o)->(i,f,o,g), bf16 MXU operands,
    projection zero-padded to a 128-lane output."""
    perm = jnp.concatenate([
        jnp.arange(0, d_rnn),                 # i
        jnp.arange(d_rnn, 2 * d_rnn),         # f
        jnp.arange(3 * d_rnn, 4 * d_rnn),     # o
        jnp.arange(2 * d_rnn, 3 * d_rnn),     # g
    ])
    d_out_pad = max(lane, ((d_model + lane - 1) // lane) * lane)
    w_proj_T = jnp.zeros((d_rnn, d_out_pad), jnp.bfloat16)
    w_proj_T = w_proj_T.at[:, :d_model].set(raw["w_proj"].T.astype(jnp.bfloat16))
    b_proj = jnp.zeros((1, d_out_pad), jnp.float32).at[:, :d_model].set(raw["b_proj"])
    return {
        "w_ih_T": raw["w_ih"][perm].T.astype(jnp.bfloat16),     # [d_model, 4*d_rnn]
        "w_hh_T": raw["w_hh"][perm].T.astype(jnp.bfloat16),     # [d_rnn,   4*d_rnn]
        "b": (raw["b_ih"] + raw["b_hh"])[perm][None, :].astype(jnp.float32),
        "w_proj_T": w_proj_T,                                   # [d_rnn, 128]
        "b_proj": b_proj,                                       # [1, 128]
    }


if __name__ == "__main__":
    B, L, d_model, d_rnn = 2, 8, 32, 128

    key = jax.random.PRNGKey(0)
    k_x, k_params = jax.random.split(key, 2)

    data = jax.random.normal(k_x, (B, L, d_model), jnp.float32)
    lengths = jnp.array([L, 5], dtype=jnp.int32)                    # trailing padding only
    non_pad_mask = (jnp.arange(L)[None, :] < lengths[:, None]).astype(jnp.float32)[:, :, None]

    raw = init_params(k_params, d_model, d_rnn)
    packed = pack_params(raw, d_model, d_rnn)

    out = rnn_layers_forward(data, non_pad_mask, packed)
    ref = rnn_layers_reference(data, non_pad_mask, raw)
    jax.block_until_ready((out, ref))

    assert out.shape == (B, L, d_model)
    err = float(jnp.max(jnp.abs(out - ref)))
    assert err < 2e-2, f"mismatch vs pure-JAX reference: max abs err = {err}"
    print("KERNEL_OK")
</pallas_src>

<mosaic_0001>
module attributes {stable_mosaic.version = 11 : i64} {
  func.func @lstm_proj_kernel(%arg0: memref<64x32xbf16, #tpu.memory_space<vmem>>, %arg1: memref<32x512xbf16, #tpu.memory_space<vmem>>, %arg2: memref<128x512xbf16, #tpu.memory_space<vmem>>, %arg3: memref<1x512xf32, #tpu.memory_space<vmem>>, %arg4: memref<128x128xbf16, #tpu.memory_space<vmem>>, %arg5: memref<1x128xf32, #tpu.memory_space<vmem>>, %arg6: memref<64x128xf32, #tpu.memory_space<vmem>>, %arg7: memref<64x512xf32, #tpu.memory_space<vmem>>, %arg8: memref<64x128xbf16, #tpu.memory_space<vmem>>) attributes {dimension_semantics = [], scalar_prefetch = 0 : i64, scratch_operands = 2 : i64, tpu.core_type = #tpu.core_type<tc>} {
    %c0 = arith.constant 0 : index
    %c0_0 = arith.constant 0 : index
    %0 = vector.load %arg0[%c0, %c0_0] : memref<64x32xbf16, #tpu.memory_space<vmem>>, vector<64x32xbf16>
    %c0_1 = arith.constant 0 : index
    %c0_2 = arith.constant 0 : index
    %1 = vector.load %arg1[%c0_1, %c0_2] : memref<32x512xbf16, #tpu.memory_space<vmem>>, vector<32x512xbf16>
    %cst = arith.constant dense<0.000000e+00> : vector<64x512xf32>
    %2 = tpu.matmul %0, %1, %cst {dimension_numbers = #tpu.dot_dimension_numbers<[1], [0], [0], [1], [0, 0, 1, 1], [], []>} : vector<64x32xbf16>, vector<32x512xbf16>, vector<64x512xf32> -> vector<64x512xf32>
    %c0_3 = arith.constant 0 : index
    %c0_4 = arith.constant 0 : index
    %3 = vector.load %arg3[%c0_3, %c0_4] : memref<1x512xf32, #tpu.memory_space<vmem>>, vector<1x512xf32>
    %4 = vector.broadcast %3 : vector<1x512xf32> to vector<64x512xf32>
    %5 = arith.addf %2, %4 : vector<64x512xf32>
    %c0_5 = arith.constant 0 : index
    %c0_6 = arith.constant 0 : index
    %6 = vector.load %arg7[%c0_5, %c0_6] : memref<64x512xf32, #tpu.memory_space<vmem>>, vector<64x512xf32>
    tpu.vector_store %arg7[%c0_5, %c0_6], %5 {strides = array<i32>} : memref<64x512xf32, #tpu.memory_space<vmem>>, vector<64x512xf32>,
    %cst_7 = arith.constant 0.000000e+00 : f32
    %7 = vector.broadcast %cst_7 : f32 to vector<8x128xf32>
    %cst_8 = arith.constant 0.000000e+00 : f32
    %8 = vector.broadcast %cst_8 : f32 to vector<8x128xf32>
    %c0_9 = arith.constant 0 : index
    %c0_10 = arith.constant 0 : index
    %9 = vector.load %arg7[%c0_9, %c0_10] : memref<64x512xf32, #tpu.memory_space<vmem>>, vector<8x512xf32>
    %10 = arith.truncf %7 : vector<8x128xf32> to vector<8x128xbf16>
    %c0_11 = arith.constant 0 : index
    %c0_12 = arith.constant 0 : index
    %11 = vector.load %arg2[%c0_11, %c0_12] : memref<128x512xbf16, #tpu.memory_space<vmem>>, vector<128x512xbf16>
    %cst_13 = arith.constant dense<0.000000e+00> : vector<8x512xf32>
    %12 = tpu.matmul %10, %11, %cst_13 {dimension_numbers = #tpu.dot_dimension_numbers<[1], [0], [0], [1], [0, 0, 1, 1], [], []>} : vector<8x128xbf16>, vector<128x512xbf16>, vector<8x512xf32> -> vector<8x512xf32>
    %13 = arith.addf %9, %12 : vector<8x512xf32>
    %14 = vector.extract_strided_slice %13 {offsets = [0, 0], sizes = [8, 384], strides = [1, 1]} : vector<8x512xf32> to vector<8x384xf32>
    %15 = arith.negf %14 : vector<8x384xf32>
    %16 = math.exp %15 : vector<8x384xf32>
    %cst_14 = arith.constant 1.000000e+00 : f32
    %17 = vector.broadcast %cst_14 : f32 to vector<8x384xf32>
    %18 = arith.addf %17, %16 : vector<8x384xf32>
    %19 = arith.divf %17, %18 : vector<8x384xf32>
    %20 = vector.extract_strided_slice %13 {offsets = [0, 384], sizes = [8, 128], strides = [1, 1]} : vector<8x512xf32> to vector<8x128xf32>
    %21 = math.tanh %20 : vector<8x128xf32>
    %22 = vector.extract_strided_slice %19 {offsets = [0, 0], sizes = [8, 128], strides = [1, 1]} : vector<8x384xf32> to vector<8x128xf32>
    %23 = vector.extract_strided_slice %19 {offsets = [0, 128], sizes = [8, 128], strides = [1, 1]} : vector<8x384xf32> to vector<8x128xf32>
    %24 = vector.extract_strided_slice %19 {offsets = [0, 256], sizes = [8, 128], strides = [1, 1]} : vector<8x384xf32> to vector<8x128xf32>
    %25 = arith.mulf %23, %8 : vector<8x128xf32>
    %26 = arith.mulf %22, %21 : vector<8x128xf32>
    %27 = arith.addf %25, %26 : vector<8x128xf32>
    %28 = math.tanh %27 : vector<8x128xf32>
    %29 = arith.mulf %24, %28 : vector<8x128xf32>
    %30 = arith.truncf %29 : vector<8x128xf32> to vector<8x128xbf16>
    %c0_15 = arith.constant 0 : index
    %c0_16 = arith.constant 0 : index
    %31 = vector.load %arg8[%c0_15, %c0_16] : memref<64x128xbf16, #tpu.memory_space<vmem>>, vector<8x128xbf16>
    tpu.vector_store %arg8[%c0_15, %c0_16], %30 {strides = array<i32>} : memref<64x128xbf16, #tpu.memory_space<vmem>>, vector<8x128xbf16>,
    %c8 = arith.constant 8 : index
    %c0_17 = arith.constant 0 : index
    %32 = vector.load %arg7[%c8, %c0_17] : memref<64x512xf32, #tpu.memory_space<vmem>>, vector<8x512xf32>
    %33 = arith.truncf %29 : vector<8x128xf32> to vector<8x128xbf16>
    %c0_18 = arith.constant 0 : index
    %c0_19 = arith.constant 0 : index
    %34 = vector.load %arg2[%c0_18, %c0_19] : memref<128x512xbf16, #tpu.memory_space<vmem>>, vector<128x512xbf16>
    %cst_20 = arith.constant dense<0.000000e+00> : vector<8x512xf32>
    %35 = tpu.matmul %33, %34, %cst_20 {dimension_numbers = #tpu.dot_dimension_numbers<[1], [0], [0], [1], [0, 0, 1, 1], [], []>} : vector<8x128xbf16>, vector<128x512xbf16>, vector<8x512xf32> -> vector<8x512xf32>
    %36 = arith.addf %32, %35 : vector<8x512xf32>
    %37 = vector.extract_strided_slice %36 {offsets = [0, 0], sizes = [8, 384], strides = [1, 1]} : vector<8x512xf32> to vector<8x384xf32>
    %38 = arith.negf %37 : vector<8x384xf32>
    %39 = math.exp %38 : vector<8x384xf32>
    %cst_21 = arith.constant 1.000000e+00 : f32
    %40 = vector.broadcast %cst_21 : f32 to vector<8x384xf32>
    %41 = arith.addf %40, %39 : vector<8x384xf32>
    %42 = arith.divf %40, %41 : vector<8x384xf32>
    %43 = vector.extract_strided_slice %36 {offsets = [0, 384], sizes = [8, 128], strides = [1, 1]} : vector<8x512xf32> to vector<8x128xf32>
    %44 = math.tanh %43 : vector<8x128xf32>
    %45 = vector.extract_strided_slice %42 {offsets = [0, 0], sizes = [8, 128], strides = [1, 1]} : vector<8x384xf32> to vector<8x128xf32>
    %46 = vector.extract_strided_slice %42 {offsets = [0, 128], sizes = [8, 128], strides = [1, 1]} : vector<8x384xf32> to vector<8x128xf32>
    %47 = vector.extract_strided_slice %42 {offsets = [0, 256], sizes = [8, 128], strides = [1, 1]} : vector<8x384xf32> to vector<8x128xf32>
    %48 = arith.mulf %46, %27 : vector<8x128xf32>
    %49 = arith.mulf %45, %44 : vector<8x128xf32>
    %50 = arith.addf %48, %49 : vector<8x128xf32>
    %51 = math.tanh %50 : vector<8x128xf32>
    %52 = arith.mulf %47, %51 : vector<8x128xf32>
    %53 = arith.truncf %52 : vector<8x128xf32> to vector<8x128xbf16>
    %c8_22 = arith.constant 8 : index
    %c0_23 = arith.constant 0 : index
    %54 = vector.load %arg8[%c8_22, %c0_23] : memref<64x128xbf16, #tpu.memory_space<vmem>>, vector<8x128xbf16>
    tpu.vector_store %arg8[%c8_22, %c0_23], %53 {strides = array<i32>} : memref<64x128xbf16, #tpu.memory_space<vmem>>, vector<8x128xbf16>,
    %c16 = arith.constant 16 : index
    %c0_24 = arith.constant 0 : index
    %55 = vector.load %arg7[%c16, %c0_24] : memref<64x512xf32, #tpu.memory_space<vmem>>, vector<8x512xf32>
    %56 = arith.truncf %52 : vector<8x128xf32> to vector<8x128xbf16>
    %c0_25 = arith.constant 0 : index
    %c0_26 = arith.constant 0 : index
    %57 = vector.load %arg2[%c0_25, %c0_26] : memref<128x512xbf16, #tpu.memory_space<vmem>>, vector<128x512xbf16>
    %cst_27 = arith.constant dense<0.000000e+00> : vector<8x512xf32>
    %58 = tpu.matmul %56, %57, %cst_27 {dimension_numbers = #tpu.dot_dimension_numbers<[1], [0], [0], [1], [0, 0, 1, 1], [], []>} : vector<8x128xbf16>, vector<128x512xbf16>, vector<8x512xf32> -> vector<8x512xf32>
    %59 = arith.addf %55, %58 : vector<8x512xf32>
    %60 = vector.extract_strided_slice %59 {offsets = [0, 0], sizes = [8, 384], strides = [1, 1]} : vector<8x512xf32> to vector<8x384xf32>
    %61 = arith.negf %60 : vector<8x384xf32>
    %62 = math.exp %61 : vector<8x384xf32>
    %cst_28 = arith.constant 1.000000e+00 : f32
    %63 = vector.broadcast %cst_28 : f32 to vector<8x384xf32>
    %64 = arith.addf %63, %62 : vector<8x384xf32>
    %65 = arith.divf %63, %64 : vector<8x384xf32>
    %66 = vector.extract_strided_slice %59 {offsets = [0, 384], sizes = [8, 128], strides = [1, 1]} : vector<8x512xf32> to vector<8x128xf32>
    %67 = math.tanh %66 : vector<8x128xf32>
    %68 = vector.extract_strided_slice %65 {offsets = [0, 0], sizes = [8, 128], strides = [1, 1]} : vector<8x384xf32> to vector<8x128xf32>
    %69 = vector.extract_strided_slice %65 {offsets = [0, 128], sizes = [8, 128], strides = [1, 1]} : vector<8x384xf32> to vector<8x128xf32>
    %70 = vector.extract_strided_slice %65 {offsets = [0, 256], sizes = [8, 128], strides = [1, 1]} : vector<8x384xf32> to vector<8x128xf32>
    %71 = arith.mulf %69, %50 : vector<8x128xf32>
    %72 = arith.mulf %68, %67 : vector<8x128xf32>
    %73 = arith.addf %71, %72 : vector<8x128xf32>
    %74 = math.tanh %73 : vector<8x128xf32>
    %75 = arith.mulf %70, %74 : vector<8x128xf32>
    %76 = arith.truncf %75 : vector<8x128xf32> to vector<8x128xbf16>
    %c16_29 = arith.constant 16 : index
    %c0_30 = arith.constant 0 : index
    %77 = vector.load %arg8[%c16_29, %c0_30] : memref<64x128xbf16, #tpu.memory_space<vmem>>, vector<8x128xbf16>
    tpu.vector_store %arg8[%c16_29, %c0_30], %76 {strides = array<i32>} : memref<64x128xbf16, #tpu.memory_space<vmem>>, vector<8x128xbf16>,
    %c24 = arith.constant 24 : index
    %c0_31 = arith.constant 0 : index
    %78 = vector.load %arg7[%c24, %c0_31] : memref<64x512xf32, #tpu.memory_space<vmem>>, vector<8x512xf32>
    %79 = arith.truncf %75 : vector<8x128xf32> to vector<8x128xbf16>
    %c0_32 = arith.constant 0 : index
    %c0_33 = arith.constant 0 : index
    %80 = vector.load %arg2[%c0_32, %c0_33] : memref<128x512xbf16, #tpu.memory_space<vmem>>, vector<128x512xbf16>
    %cst_34 = arith.constant dense<0.000000e+00> : vector<8x512xf32>
    %81 = tpu.matmul %79, %80, %cst_34 {dimension_numbers = #tpu.dot_dimension_numbers<[1], [0], [0], [1], [0, 0, 1, 1], [], []>} : vector<8x128xbf16>, vector<128x512xbf16>, vector<8x512xf32> -> vector<8x512xf32>
    %82 = arith.addf %78, %81 : vector<8x512xf32>
    %83 = vector.extract_strided_slice %82 {offsets = [0, 0], sizes = [8, 384], strides = [1, 1]} : vector<8x512xf32> to vector<8x384xf32>
    %84 = arith.negf %83 : vector<8x384xf32>
    %85 = math.exp %84 : vector<8x384xf32>
    %cst_35 = arith.constant 1.000000e+00 : f32
    %86 = vector.broadcast %cst_35 : f32 to vector<8x384xf32>
    %87 = arith.addf %86, %85 : vector<8x384xf32>
    %88 = arith.divf %86, %87 : vector<8x384xf32>
    %89 = vector.extract_strided_slice %82 {offsets = [0, 384], sizes = [8, 128], strides = [1, 1]} : vector<8x512xf32> to vector<8x128xf32>
    %90 = math.tanh %89 : vector<8x128xf32>
    %91 = vector.extract_strided_slice %88 {offsets = [0, 0], sizes = [8, 128], strides = [1, 1]} : vector<8x384xf32> to vector<8x128xf32>
    %92 = vector.extract_strided_slice %88 {offsets = [0, 128], sizes = [8, 128], strides = [1, 1]} : vector<8x384xf32> to vector<8x128xf32>
    %93 = vector.extract_strided_slice %88 {offsets = [0, 256], sizes = [8, 128], strides = [1, 1]} : vector<8x384xf32> to vector<8x128xf32>
    %94 = arith.mulf %92, %73 : vector<8x128xf32>
    %95 = arith.mulf %91, %90 : vector<8x128xf32>
    %96 = arith.addf %94, %95 : vector<8x128xf32>
    %97 = math.tanh %96 : vector<8x128xf32>
    %98 = arith.mulf %93, %97 : vector<8x128xf32>
    %99 = arith.truncf %98 : vector<8x128xf32> to vector<8x128xbf16>
    %c24_36 = arith.constant 24 : index
    %c0_37 = arith.constant 0 : index
    %100 = vector.load %arg8[%c24_36, %c0_37] : memref<64x128xbf16, #tpu.memory_space<vmem>>, vector<8x128xbf16>
    tpu.vector_store %arg8[%c24_36, %c0_37], %99 {strides = array<i32>} : memref<64x128xbf16, #tpu.memory_space<vmem>>, vector<8x128xbf16>,
    %c32 = arith.constant 32 : index
    %c0_38 = arith.constant 0 : index
    %101 = vector.load %arg7[%c32, %c0_38] : memref<64x512xf32, #tpu.memory_space<vmem>>, vector<8x512xf32>
    %102 = arith.truncf %98 : vector<8x128xf32> to vector<8x128xbf16>
    %c0_39 = arith.constant 0 : index
    %c0_40 = arith.constant 0 : index
    %103 = vector.load %arg2[%c0_39, %c0_40] : memref<128x512xbf16, #tpu.memory_space<vmem>>, vector<128x512xbf16>
    %cst_41 = arith.constant dense<0.000000e+00> : vector<8x512xf32>
    %104 = tpu.matmul %102, %103, %cst_41 {dimension_numbers = #tpu.dot_dimension_numbers<[1], [0], [0], [1], [0, 0, 1, 1], [], []>} : vector<8x128xbf16>, vector<128x512xbf16>, vector<8x512xf32> -> vector<8x512xf32>
    %105 = arith.addf %101, %104 : vector<8x512xf32>
    %106 = vector.extract_strided_slice %105 {offsets = [0, 0], sizes = [8, 384], strides = [1, 1]} : vector<8x512xf32> to vector<8x384xf32>
    %107 = arith.negf %106 : vector<8x384xf32>
    %108 = math.exp %107 : vector<8x384xf32>
    %cst_42 = arith.constant 1.000000e+00 : f32
    %109 = vector.broadcast %cst_42 : f32 to vector<8x384xf32>
    %110 = arith.addf %109, %108 : vector<8x384xf32>
    %111 = arith.divf %109, %110 : vector<8x384xf32>
    %112 = vector.extract_strided_slice %105 {offsets = [0, 384], sizes = [8, 128], strides = [1, 1]} : vector<8x512xf32> to vector<8x128xf32>
    %113 = math.tanh %112 : vector<8x128xf32>
    %114 = vector.extract_strided_slice %111 {offsets = [0, 0], sizes = [8, 128], strides = [1, 1]} : vector<8x384xf32> to vector<8x128xf32>
    %115 = vector.extract_strided_slice %111 {offsets = [0, 128], sizes = [8, 128], strides = [1, 1]} : vector<8x384xf32> to vector<8x128xf32>
    %116 = vector.extract_strided_slice %111 {offsets = [0, 256], sizes = [8, 128], strides = [1, 1]} : vector<8x384xf32> to vector<8x128xf32>
    %117 = arith.mulf %115, %96 : vector<8x128xf32>
    %118 = arith.mulf %114, %113 : vector<8x128xf32>
    %119 = arith.addf %117, %118 : vector<8x128xf32>
    %120 = math.tanh %119 : vector<8x128xf32>
    %121 = arith.mulf %116, %120 : vector<8x128xf32>
    %122 = arith.truncf %121 : vector<8x128xf32> to vector<8x128xbf16>
    %c32_43 = arith.constant 32 : index
    %c0_44 = arith.constant 0 : index
    %123 = vector.load %arg8[%c32_43, %c0_44] : memref<64x128xbf16, #tpu.memory_space<vmem>>, vector<8x128xbf16>
    tpu.vector_store %arg8[%c32_43, %c0_44], %122 {strides = array<i32>} : memref<64x128xbf16, #tpu.memory_space<vmem>>, vector<8x128xbf16>,
    %c40 = arith.constant 40 : index
    %c0_45 = arith.constant 0 : index
    %124 = vector.load %arg7[%c40, %c0_45] : memref<64x512xf32, #tpu.memory_space<vmem>>, vector<8x512xf32>
    %125 = arith.truncf %121 : vector<8x128xf32> to vector<8x128xbf16>
    %c0_46 = arith.constant 0 : index
    %c0_47 = arith.constant 0 : index
    %126 = vector.load %arg2[%c0_46, %c0_47] : memref<128x512xbf16, #tpu.memory_space<vmem>>, vector<128x512xbf16>
    %cst_48 = arith.constant dense<0.000000e+00> : vector<8x512xf32>
    %127 = tpu.matmul %125, %126, %cst_48 {dimension_numbers = #tpu.dot_dimension_numbers<[1], [0], [0], [1], [0, 0, 1, 1], [], []>} : vector<8x128xbf16>, vector<128x512xbf16>, vector<8x512xf32> -> vector<8x512xf32>
    %128 = arith.addf %124, %127 : vector<8x512xf32>
    %129 = vector.extract_strided_slice %128 {offsets = [0, 0], sizes = [8, 384], strides = [1, 1]} : vector<8x512xf32> to vector<8x384xf32>
    %130 = arith.negf %129 : vector<8x384xf32>
    %131 = math.exp %130 : vector<8x384xf32>
    %cst_49 = arith.constant 1.000000e+00 : f32
    %132 = vector.broadcast %cst_49 : f32 to vector<8x384xf32>
    %133 = arith.addf %132, %131 : vector<8x384xf32>
    %134 = arith.divf %132, %133 : vector<8x384xf32>
    %135 = vector.extract_strided_slice %128 {offsets = [0, 384], sizes = [8, 128], strides = [1, 1]} : vector<8x512xf32> to vector<8x128xf32>
    %136 = math.tanh %135 : vector<8x128xf32>
    %137 = vector.extract_strided_slice %134 {offsets = [0, 0], sizes = [8, 128], strides = [1, 1]} : vector<8x384xf32> to vector<8x128xf32>
    %138 = vector.extract_strided_slice %134 {offsets = [0, 128], sizes = [8, 128], strides = [1, 1]} : vector<8x384xf32> to vector<8x128xf32>
    %139 = vector.extract_strided_slice %134 {offsets = [0, 256], sizes = [8, 128], strides = [1, 1]} : vector<8x384xf32> to vector<8x128xf32>
    %140 = arith.mulf %138, %119 : vector<8x128xf32>
    %141 = arith.mulf %137, %136 : vector<8x128xf32>
    %142 = arith.addf %140, %141 : vector<8x128xf32>
    %143 = math.tanh %142 : vector<8x128xf32>
    %144 = arith.mulf %139, %143 : vector<8x128xf32>
    %145 = arith.truncf %144 : vector<8x128xf32> to vector<8x128xbf16>
    %c40_50 = arith.constant 40 : index
    %c0_51 = arith.constant 0 : index
    %146 = vector.load %arg8[%c40_50, %c0_51] : memref<64x128xbf16, #tpu.memory_space<vmem>>, vector<8x128xbf16>
    tpu.vector_store %arg8[%c40_50, %c0_51], %145 {strides = array<i32>} : memref<64x128xbf16, #tpu.memory_space<vmem>>, vector<8x128xbf16>,
    %c48 = arith.constant 48 : index
    %c0_52 = arith.constant 0 : index
    %147 = vector.load %arg7[%c48, %c0_52] : memref<64x512xf32, #tpu.memory_space<vmem>>, vector<8x512xf32>
    %148 = arith.truncf %144 : vector<8x128xf32> to vector<8x128xbf16>
    %c0_53 = arith.constant 0 : index
    %c0_54 = arith.constant 0 : index
    %149 = vector.load %arg2[%c0_53, %c0_54] : memref<128x512xbf16, #tpu.memory_space<vmem>>, vector<128x512xbf16>
    %cst_55 = arith.constant dense<0.000000e+00> : vector<8x512xf32>
    %150 = tpu.matmul %148, %149, %cst_55 {dimension_numbers = #tpu.dot_dimension_numbers<[1], [0], [0], [1], [0, 0, 1, 1], [], []>} : vector<8x128xbf16>, vector<128x512xbf16>, vector<8x512xf32> -> vector<8x512xf32>
    %151 = arith.addf %147, %150 : vector<8x512xf32>
    %152 = vector.extract_strided_slice %151 {offsets = [0, 0], sizes = [8, 384], strides = [1, 1]} : vector<8x512xf32> to vector<8x384xf32>
    %153 = arith.negf %152 : vector<8x384xf32>
    %154 = math.exp %153 : vector<8x384xf32>
    %cst_56 = arith.constant 1.000000e+00 : f32
    %155 = vector.broadcast %cst_56 : f32 to vector<8x384xf32>
    %156 = arith.addf %155, %154 : vector<8x384xf32>
    %157 = arith.divf %155, %156 : vector<8x384xf32>
    %158 = vector.extract_strided_slice %151 {offsets = [0, 384], sizes = [8, 128], strides = [1, 1]} : vector<8x512xf32> to vector<8x128xf32>
    %159 = math.tanh %158 : vector<8x128xf32>
    %160 = vector.extract_strided_slice %157 {offsets = [0, 0], sizes = [8, 128], strides = [1, 1]} : vector<8x384xf32> to vector<8x128xf32>
    %161 = vector.extract_strided_slice %157 {offsets = [0, 128], sizes = [8, 128], strides = [1, 1]} : vector<8x384xf32> to vector<8x128xf32>
    %162 = vector.extract_strided_slice %157 {offsets = [0, 256], sizes = [8, 128], strides = [1, 1]} : vector<8x384xf32> to vector<8x128xf32>
    %163 = arith.mulf %161, %142 : vector<8x128xf32>
    %164 = arith.mulf %160, %159 : vector<8x128xf32>
    %165 = arith.addf %163, %164 : vector<8x128xf32>
    %166 = math.tanh %165 : vector<8x128xf32>
    %167 = arith.mulf %162, %166 : vector<8x128xf32>
    %168 = arith.truncf %167 : vector<8x128xf32> to vector<8x128xbf16>
    %c48_57 = arith.constant 48 : index
    %c0_58 = arith.constant 0 : index
    %169 = vector.load %arg8[%c48_57, %c0_58] : memref<64x128xbf16, #tpu.memory_space<vmem>>, vector<8x128xbf16>
    tpu.vector_store %arg8[%c48_57, %c0_58], %168 {strides = array<i32>} : memref<64x128xbf16, #tpu.memory_space<vmem>>, vector<8x128xbf16>,
    %c56 = arith.constant 56 : index
    %c0_59 = arith.constant 0 : index
    %170 = vector.load %arg7[%c56, %c0_59] : memref<64x512xf32, #tpu.memory_space<vmem>>, vector<8x512xf32>
    %171 = arith.truncf %167 : vector<8x128xf32> to vector<8x128xbf16>
    %c0_60 = arith.constant 0 : index
    %c0_61 = arith.constant 0 : index
    %172 = vector.load %arg2[%c0_60, %c0_61] : memref<128x512xbf16, #tpu.memory_space<vmem>>, vector<128x512xbf16>
    %cst_62 = arith.constant dense<0.000000e+00> : vector<8x512xf32>
    %173 = tpu.matmul %171, %172, %cst_62 {dimension_numbers = #tpu.dot_dimension_numbers<[1], [0], [0], [1], [0, 0, 1, 1], [], []>} : vector<8x128xbf16>, vector<128x512xbf16>, vector<8x512xf32> -> vector<8x512xf32>
    %174 = arith.addf %170, %173 : vector<8x512xf32>
    %175 = vector.extract_strided_slice %174 {offsets = [0, 0], sizes = [8, 384], strides = [1, 1]} : vector<8x512xf32> to vector<8x384xf32>
    %176 = arith.negf %175 : vector<8x384xf32>
    %177 = math.exp %176 : vector<8x384xf32>
    %cst_63 = arith.constant 1.000000e+00 : f32
    %178 = vector.broadcast %cst_63 : f32 to vector<8x384xf32>
    %179 = arith.addf %178, %177 : vector<8x384xf32>
    %180 = arith.divf %178, %179 : vector<8x384xf32>
    %181 = vector.extract_strided_slice %174 {offsets = [0, 384], sizes = [8, 128], strides = [1, 1]} : vector<8x512xf32> to vector<8x128xf32>
    %182 = math.tanh %181 : vector<8x128xf32>
    %183 = vector.extract_strided_slice %180 {offsets = [0, 0], sizes = [8, 128], strides = [1, 1]} : vector<8x384xf32> to vector<8x128xf32>
    %184 = vector.extract_strided_slice %180 {offsets = [0, 128], sizes = [8, 128], strides = [1, 1]} : vector<8x384xf32> to vector<8x128xf32>
    %185 = vector.extract_strided_slice %180 {offsets = [0, 256], sizes = [8, 128], strides = [1, 1]} : vector<8x384xf32> to vector<8x128xf32>
    %186 = arith.mulf %184, %165 : vector<8x128xf32>
    %187 = arith.mulf %183, %182 : vector<8x128xf32>
    %188 = arith.addf %186, %187 : vector<8x128xf32>
    %189 = math.tanh %188 : vector<8x128xf32>
    %190 = arith.mulf %185, %189 : vector<8x128xf32>
    %191 = arith.truncf %190 : vector<8x128xf32> to vector<8x128xbf16>
    %c56_64 = arith.constant 56 : index
    %c0_65 = arith.constant 0 : index
    %192 = vector.load %arg8[%c56_64, %c0_65] : memref<64x128xbf16, #tpu.memory_space<vmem>>, vector<8x128xbf16>
    tpu.vector_store %arg8[%c56_64, %c0_65], %191 {strides = array<i32>} : memref<64x128xbf16, #tpu.memory_space<vmem>>, vector<8x128xbf16>,
    %c0_66 = arith.constant 0 : index
    %c0_67 = arith.constant 0 : index
    %193 = vector.load %arg8[%c0_66, %c0_67] : memref<64x128xbf16, #tpu.memory_space<vmem>>, vector<64x128xbf16>
    %c0_68 = arith.constant 0 : index
    %c0_69 = arith.constant 0 : index
    %194 = vector.load %arg4[%c0_68, %c0_69] : memref<128x128xbf16, #tpu.memory_space<vmem>>, vector<128x128xbf16>
    %cst_70 = arith.constant dense<0.000000e+00> : vector<64x128xf32>
    %195 = tpu.matmul %193, %194, %cst_70 {dimension_numbers = #tpu.dot_dimension_numbers<[1], [0], [0], [1], [0, 0, 1, 1], [], []>} : vector<64x128xbf16>, vector<128x128xbf16>, vector<64x128xf32> -> vector<64x128xf32>
    %c0_71 = arith.constant 0 : index
    %c0_72 = arith.constant 0 : index
    %196 = vector.load %arg5[%c0_71, %c0_72] : memref<1x128xf32, #tpu.memory_space<vmem>>, vector<1x128xf32>
    %197 = vector.broadcast %196 : vector<1x128xf32> to vector<64x128xf32>
    %198 = arith.addf %195, %197 : vector<64x128xf32>
    %c0_73 = arith.constant 0 : index
    %c0_74 = arith.constant 0 : index
    %199 = vector.load %arg6[%c0_73, %c0_74] : memref<64x128xf32, #tpu.memory_space<vmem>>, vector<64x128xf32>
    tpu.vector_store %arg6[%c0_73, %c0_74], %198 {strides = array<i32>} : memref<64x128xf32, #tpu.memory_space<vmem>>, vector<64x128xf32>,
    return
  }
}

</mosaic_0001>

<llo_original>
// kernel: tpu_custom_call.1
$region0: #{tpu_custom_call.1}
  #allocation0 [shape = 'u32[]', space=smem, size = 0x4, offset = 0x4, fixed_abs, tag = 'smem constant byte address 0x4 - core index']
  #allocation1 [shape = 'u32[144,128]{1,0:T(1,128)}', space=vmem, size = 0x12000, scoped, tag = 'internal scratch']
  #allocation2 [shape = 'f32[64,512]{1,0:T(8,128)}', space=vmem, size = 0x20000, scoped, tag = 'scratch operand']
  #allocation3 [shape = 'bf16[64,128]{1,0:T(8,128)(2,1)}', space=vmem, size = 0x4000, scoped, tag = 'scratch operand']
  %s0 = inlined_call_operand.vmem [shape: bf16[64,32], index: 0, kind: input, shape index: {}]
  %s1 = inlined_call_operand.hbm [shape: bf16[32,512], index: 1, kind: input, shape index: {}]
  %s2 = inlined_call_operand.hbm [shape: bf16[128,512], index: 2, kind: input, shape index: {}]
  %s3 = inlined_call_operand.vmem [shape: f32[1,512], index: 3, kind: input, shape index: {}]
  %s4 = inlined_call_operand.hbm [shape: bf16[128,128], index: 4, kind: input, shape index: {}]
  %s5 = inlined_call_operand.vmem [shape: f32[1,128], index: 5, kind: input, shape index: {}]
  %s6 = inlined_call_operand.hbm [shape: f32[64,128], index: 6, kind: output, shape index: {}]
  %s7 = sld [smem:[#allocation0]]
  $region46: #{tpu_custom_call.1} parent=0
    _
  %s9 = ssub.s32 1, %s7
  %s10 = scalar_select 0, %s9, %s7
  $region1: #{tpu_custom_call.1} parent=0
    #allocation4 [shape = 'u8[32768]{0}', space=vmem, size = 0x8000, scoped, tag = 'input window, operand 1, single buffered']
    #allocation5 [shape = 's32[1]{0}', space=sflag, size = 0x4, scoped, tag = 'scoped memory for tpu_custom_call.1']
    #allocation6 [shape = 's32[1]{0}', space=sflag, size = 0x4, scoped, tag = 'scoped memory for tpu_custom_call.1']
    #allocation7 [shape = 'u8[131072]{0}', space=vmem, size = 0x20000, scoped, tag = 'input window, operand 2, single buffered']
    #allocation8 [shape = 's32[1]{0}', space=sflag, size = 0x4, scoped, tag = 'scoped memory for tpu_custom_call.1']
    #allocation9 [shape = 'u8[32768]{0}', space=vmem, size = 0x8000, scoped, tag = 'input window, operand 4, single buffered']
    #allocation10 [shape = 'u8[32768]{0}', space=vmem, size = 0x8000, scoped, tag = 'output window, operand 0, single buffered']
    %11 = vsyncpa [#allocation5], 0
    %12 = vsyncpa [#allocation8], 0
    %13 = vsyncpa [#allocation6], 0
    // Predicated region
    $region2: #{tpu_custom_call.1} parent=1 // pred_check
      _
    $region3: #{tpu_custom_call.1} parent=1 // pred_check_branch
      %15 = sbr.rel (0) target = $region5
    $region4: #{tpu_custom_call.1} parent=1 // pred_region
      _
    $region5: #{tpu_custom_call.1} parent=1 // pred_fallthru
      _
    // Predicated region
    $region6: #{tpu_custom_call.1} parent=1 // pred_check
      _
    $region7: #{tpu_custom_call.1} parent=1 // pred_check_branch
      %17 = sbr.rel (0) target = $region9
    $region8: #{tpu_custom_call.1} parent=1 // pred_region
      %s19 = ssub.s32 1024, 1024
      %20 = vsyncadd [#allocation5], %s19
      %s21 = sshll.u32 [#allocation4], 4
      %s22 = int_to_ptr.vmem [resolvable:$true] %s21
      %27 = dma.hbm_to_vmem [thread:$0]  %s1, 1024, %s22, [#allocation5], 256, 256, 16
    $region9: #{tpu_custom_call.1} parent=1 // pred_fallthru
      _
    // Predicated region
    $region10: #{tpu_custom_call.1} parent=1 // pred_check
      _
    $region11: #{tpu_custom_call.1} parent=1 // pred_check_branch
      %29 = sbr.rel (0) target = $region13
    $region12: #{tpu_custom_call.1} parent=1 // pred_region
      %s31 = ssub.s32 4096, 4096
      %32 = vsyncadd [#allocation8], %s31
      %s33 = sshll.u32 [#allocation7], 4
      %s34 = int_to_ptr.vmem [resolvable:$true] %s33
      %39 = dma.hbm_to_vmem [thread:$0]  %s2, 4096, %s34, [#allocation8], 256, 256, 16
    $region13: #{tpu_custom_call.1} parent=1 // pred_fallthru
      _
    // Predicated region
    $region14: #{tpu_custom_call.1} parent=1 // pred_check
      _
    $region15: #{tpu_custom_call.1} parent=1 // pred_check_branch
      %41 = sbr.rel (0) target = $region17
    $region16: #{tpu_custom_call.1} parent=1 // pred_region
      _
    $region17: #{tpu_custom_call.1} parent=1 // pred_fallthru
      _
    // Predicated region
    $region18: #{tpu_custom_call.1} parent=1 // pred_check
      _
    $region19: #{tpu_custom_call.1} parent=1 // pred_check_branch
      %43 = sbr.rel (0) target = $region21
    $region20: #{tpu_custom_call.1} parent=1 // pred_region
      %s45 = ssub.s32 1024, 1024
      %46 = vsyncadd [#allocation8], %s45
      %s47 = sshll.u32 [#allocation9], 4
      %s48 = int_to_ptr.vmem [resolvable:$true] %s47
      %53 = dma.hbm_to_vmem [thread:$0]  %s4, 1024, %s48, [#allocation8], 64, 64, 4
    $region21: #{tpu_custom_call.1} parent=1 // pred_fallthru
      _
    // Predicated region
    $region22: #{tpu_custom_call.1} parent=1 // pred_check
      _
    $region23: #{tpu_custom_call.1} parent=1 // pred_check_branch
      %55 = sbr.rel (0) target = $region25
    $region24: #{tpu_custom_call.1} parent=1 // pred_region
      _
    $region25: #{tpu_custom_call.1} parent=1 // pred_fallthru
      _
    // Predicated region
    $region26: #{tpu_custom_call.1} parent=1 // pred_check
      _
    $region27: #{tpu_custom_call.1} parent=1 // pred_check_branch
      %57 = sbr.rel (0) target = $region29
    $region28: #{tpu_custom_call.1} parent=1 // pred_region
      %58 = dma.done [#allocation5], 1024
    $region29: #{tpu_custom_call.1} parent=1 // pred_fallthru
      _
    // Predicated region
    $region30: #{tpu_custom_call.1} parent=1 // pred_check
      _
    $region31: #{tpu_custom_call.1} parent=1 // pred_check_branch
      %60 = sbr.rel (0) target = $region33
    $region32: #{tpu_custom_call.1} parent=1 // pred_region
      %61 = dma.done [#allocation8], 4096
    $region33: #{tpu_custom_call.1} parent=1 // pred_fallthru
      _
    // Predicated region
    $region34: #{tpu_custom_call.1} parent=1 // pred_check
      _
    $region35: #{tpu_custom_call.1} parent=1 // pred_check_branch
      %63 = sbr.rel (0) target = $region37
    $region36: #{tpu_custom_call.1} parent=1 // pred_region
      %64 = dma.done [#allocation8], 1024
    $region37: #{tpu_custom_call.1} parent=1 // pred_fallthru
      _
    %v66 = vld [vmem:[%s0] sm:$0xf]
    %v67 = vld [vmem:[%s0 + $0x4] sm:$0xf]
    %v68 = vld [vmem:[%s0 + $0x8] sm:$0xf]
    %v69 = vld [vmem:[%s0 + $0xc] sm:$0xf]
    %v70 = vld [vmem:[%s0 + $0x10] sm:$0xf]
    %v71 = vld [vmem:[%s0 + $0x14] sm:$0xf]
    %v72 = vld [vmem:[%s0 + $0x18] sm:$0xf]
    %v73 = vld [vmem:[%s0 + $0x1c] sm:$0xf]
    %v74 = vld [vmem:[#allocation4] sm:$0xff]
    %v75 = vld [vmem:[#allocation4 + $0x8] sm:$0xff]
    %v76 = vld [vmem:[#allocation4 + $0x10] sm:$0xff]
    %v77 = vld [vmem:[#allocation4 + $0x18] sm:$0xff]
    %v78 = vld [vmem:[#allocation4 + $0x20] sm:$0xff]
    %v79 = vld [vmem:[#allocation4 + $0x28] sm:$0xff]
    %v80 = vld [vmem:[#allocation4 + $0x30] sm:$0xff]
    %v81 = vld [vmem:[#allocation4 + $0x38] sm:$0xff]
    %v82 = vld [vmem:[%s3] sm:$0xf]
    %v84 = vlaneseq
    %v85 = vshrl.u32 %v84, 7
    %v86 = vsub.s32 0, %v85
    %v87 = vrot.slane %v82, %v86
    %v88 = vlaneseq
    %v89 = vshrl.u32 %v88, 7
    %v90 = vsub.s32 1, %v89
    %v91 = vrot.slane %v82, %v90
    %v92 = vlaneseq
    %v93 = vshrl.u32 %v92, 7
    %v94 = vsub.s32 2, %v93
    %v95 = vrot.slane %v82, %v94
    %v96 = vlaneseq
    %v97 = vshrl.u32 %v96, 7
    %v98 = vsub.s32 3, %v97
    %v99 = vrot.slane %v82, %v98
    %v112 = vunpack.c.l.b16 %v66
    %v113 = vunpack.c.l.b16 %v67
    %v114 = vunpack.c.l.b16 %v68
    %v115 = vunpack.c.l.b16 %v69
    %v116 = vunpack.c.l.b16 %v70
    %v117 = vunpack.c.l.b16 %v71
    %v118 = vunpack.c.l.b16 %v72
    %v119 = vunpack.c.l.b16 %v73
    %v120 = vpack.c.b16 %v113, %v112
    %v121 = vpack.c.b16 %v115, %v114
    %v122 = vpack.c.b16 %v117, %v116
    %v123 = vpack.c.b16 %v119, %v118
    %v132 = vunpack.c.l.b16 %v74
    %v133 = vunpack.c.h.b16 %v74
    %v134 = vunpack.c.l.b16 %v75
    %v135 = vunpack.c.h.b16 %v75
    %v136 = vunpack.c.l.b16 %v76
    %v137 = vunpack.c.h.b16 %v76
    %v138 = vunpack.c.l.b16 %v77
    %v139 = vunpack.c.h.b16 %v77
    %v140 = vunpack.c.l.b16 %v78
    %v141 = vunpack.c.h.b16 %v78
    %v142 = vunpack.c.l.b16 %v79
    %v143 = vunpack.c.h.b16 %v79
    %v144 = vunpack.c.l.b16 %v80
    %v145 = vunpack.c.h.b16 %v80
    %v146 = vunpack.c.l.b16 %v81
    %v147 = vunpack.c.h.b16 %v81
    %v148 = vpack.c.b16 %v136, %v132
    %v149 = vpack.c.b16 %v137, %v133
    %v150 = vpack.c.b16 %v138, %v134
    %v151 = vpack.c.b16 %v139, %v135
    %v152 = vpack.c.b16 %v144, %v140
    %v153 = vpack.c.b16 %v145, %v141
    %v154 = vpack.c.b16 %v146, %v142
    %v155 = vpack.c.b16 %v147, %v143
    %vm164 = vcmask 261120
    %v166 = vsel %vm164, %v120, 0
    %v169 = vsel %vm164, %v121, 0
    %v172 = vsel %vm164, %v122, 0
    %v175 = vsel %vm164, %v123, 0
    %177 = vmatprep.subr.bf16.mxu0 0
    %178 = vmatpush1.bf16.msra.mxu0 0
    %179 = vmatprep.subr.bf16.mxu0 0
    %180 = vmatpush1.bf16.msra.mxu0 0
    %181 = vmatprep.subr.bf16.mxu0 0
    %182 = vmatpush1.bf16.msra.mxu0 0
    %183 = vmatprep.subr.bf16.mxu0 0
    %184 = vmatpush1.bf16.msra.mxu0 0
    %185 = vmatprep.subr.bf16.mxu0 0
    %186 = vmatpush1.bf16.msra.mxu0 0
    %187 = vmatprep.subr.bf16.mxu0 0
    %188 = vmatpush1.bf16.msra.mxu0 0
    %189 = vmatprep.subr.bf16.mxu0 %v153
    %190 = vmatpush1.bf16.msra.mxu0 %v152
    %191 = vmatprep.subr.bf16.mxu0 %v149
    %192 = vmatpush1.bf16.msra.mxu0 %v148
    %193 = vmatprep.subr.bf16.mxu0 0
    %194 = vmatpush2.bf16.msra.mxu0 0
    %195 = vmatprep.subr.bf16.mxu0 0
    %196 = vmatpush2.bf16.msra.mxu0 0
    %197 = vmatprep.subr.bf16.mxu0 0
    %198 = vmatpush2.bf16.msra.mxu0 0
    %199 = vmatprep.subr.bf16.mxu0 0
    %200 = vmatpush2.bf16.msra.mxu0 0
    %201 = vmatprep.subr.bf16.mxu0 0
    %202 = vmatpush2.bf16.msra.mxu0 0
    %203 = vmatprep.subr.bf16.mxu0 0
    %204 = vmatpush2.bf16.msra.mxu0 0
    %205 = vmatprep.subr.bf16.mxu0 0
    %206 = vmatpush2.bf16.msra.mxu0 0
    %207 = vmatprep.subr.bf16.mxu0 0
    %208 = vmatpush2.bf16.msra.mxu0 0
    %209 = vmatprep.mubr.bf16.mxu0 0
    %210 = vmatmul.mubr.bf16.gmra.mxu0 %v166
    %v211 = vpop.f32.mrf.mxu0
    %v212 = vadd.f32 %v87, %v211
    %v213 = vpop.f32.mrf.mxu0
    %v214 = vadd.f32 %v91, %v213
    %v215 = vpop.f32.mrf.mxu0
    %v216 = vadd.f32 %v87, %v215
    %v217 = vpop.f32.mrf.mxu0
    %v218 = vadd.f32 %v91, %v217
    %219 = vmatprep.mubr.bf16.mxu0 0
    %220 = vmatmul.mubr.bf16.gmra.mxu0 %v169
    %v221 = vpop.f32.mrf.mxu0
    %v222 = vadd.f32 %v87, %v221
    %v223 = vpop.f32.mrf.mxu0
    %v224 = vadd.f32 %v91, %v223
    %v225 = vpop.f32.mrf.mxu0
    %v226 = vadd.f32 %v87, %v225
    %v227 = vpop.f32.mrf.mxu0
    %v228 = vadd.f32 %v91, %v227
    %229 = vmatprep.mubr.bf16.mxu0 0
    %230 = vmatmul.mubr.bf16.gmra.mxu0 %v172
    %v231 = vpop.f32.mrf.mxu0
    %v232 = vadd.f32 %v87, %v231
    %v233 = vpop.f32.mrf.mxu0
    %v234 = vadd.f32 %v91, %v233
    %v235 = vpop.f32.mrf.mxu0
    %v236 = vadd.f32 %v87, %v235
    %v237 = vpop.f32.mrf.mxu0
    %v238 = vadd.f32 %v91, %v237
    %239 = vmatprep.mubr.bf16.mxu0 0
    %240 = vmatmul.mubr.bf16.gmra.mxu0 %v175
    %v241 = vpop.f32.mrf.mxu0
    %v242 = vadd.f32 %v87, %v241
    %v243 = vpop.f32.mrf.mxu0
    %v244 = vadd.f32 %v91, %v243
    %v245 = vpop.f32.mrf.mxu0
    %v246 = vadd.f32 %v87, %v245
    %v247 = vpop.f32.mrf.mxu0
    %v248 = vadd.f32 %v91, %v247
    %249 = vdwg.mxu0
    %250 = vmatprep.subr.bf16.mxu0 0
    %251 = vmatpush1.bf16.msra.mxu0 0
    %252 = vmatprep.subr.bf16.mxu0 0
    %253 = vmatpush1.bf16.msra.mxu0 0
    %254 = vmatprep.subr.bf16.mxu0 0
    %255 = vmatpush1.bf16.msra.mxu0 0
    %256 = vmatprep.subr.bf16.mxu0 0
    %257 = vmatpush1.bf16.msra.mxu0 0
    %258 = vmatprep.subr.bf16.mxu0 0
    %259 = vmatpush1.bf16.msra.mxu0 0
    %260 = vmatprep.subr.bf16.mxu0 0
    %261 = vmatpush1.bf16.msra.mxu0 0
    %262 = vmatprep.subr.bf16.mxu0 %v155
    %263 = vmatpush1.bf16.msra.mxu0 %v154
    %264 = vmatprep.subr.bf16.mxu0 %v151
    %265 = vmatpush1.bf16.msra.mxu0 %v150
    %266 = vmatprep.subr.bf16.mxu0 0
    %267 = vmatpush2.bf16.msra.mxu0 0
    %268 = vmatprep.subr.bf16.mxu0 0
    %269 = vmatpush2.bf16.msra.mxu0 0
    %270 = vmatprep.subr.bf16.mxu0 0
    %271 = vmatpush2.bf16.msra.mxu0 0
    %272 = vmatprep.subr.bf16.mxu0 0
    %273 = vmatpush2.bf16.msra.mxu0 0
    %274 = vmatprep.subr.bf16.mxu0 0
    %275 = vmatpush2.bf16.msra.mxu0 0
    %276 = vmatprep.subr.bf16.mxu0 0
    %277 = vmatpush2.bf16.msra.mxu0 0
    %278 = vmatprep.subr.bf16.mxu0 0
    %279 = vmatpush2.bf16.msra.mxu0 0
    %280 = vmatprep.subr.bf16.mxu0 0
    %281 = vmatpush2.bf16.msra.mxu0 0
    %282 = vmatprep.mubr.bf16.mxu0 0
    %283 = vmatmul.mubr.bf16.gmra.mxu0 %v166
    %v284 = vpop.f32.mrf.mxu0
    %v285 = vadd.f32 %v95, %v284
    %v286 = vpop.f32.mrf.mxu0
    %v287 = vadd.f32 %v99, %v286
    %v288 = vpop.f32.mrf.mxu0
    %v289 = vadd.f32 %v95, %v288
    %v290 = vpop.f32.mrf.mxu0
    %v291 = vadd.f32 %v99, %v290
    %292 = vmatprep.mubr.bf16.mxu0 0
    %293 = vmatmul.mubr.bf16.gmra.mxu0 %v169
    %v294 = vpop.f32.mrf.mxu0
    %v295 = vadd.f32 %v95, %v294
    %v296 = vpop.f32.mrf.mxu0
    %v297 = vadd.f32 %v99, %v296
    %v298 = vpop.f32.mrf.mxu0
    %v299 = vadd.f32 %v95, %v298
    %v300 = vpop.f32.mrf.mxu0
    %v301 = vadd.f32 %v99, %v300
    %302 = vmatprep.mubr.bf16.mxu0 0
    %303 = vmatmul.mubr.bf16.gmra.mxu0 %v172
    %v304 = vpop.f32.mrf.mxu0
    %v305 = vadd.f32 %v95, %v304
    %v306 = vpop.f32.mrf.mxu0
    %v307 = vadd.f32 %v99, %v306
    %v308 = vpop.f32.mrf.mxu0
    %v309 = vadd.f32 %v95, %v308
    %v310 = vpop.f32.mrf.mxu0
    %v311 = vadd.f32 %v99, %v310
    %312 = vmatprep.mubr.bf16.mxu0 0
    %313 = vmatmul.mubr.bf16.gmra.mxu0 %v175
    %v314 = vpop.f32.mrf.mxu0
    %v315 = vadd.f32 %v95, %v314
    %v316 = vpop.f32.mrf.mxu0
    %v317 = vadd.f32 %v99, %v316
    %v318 = vpop.f32.mrf.mxu0
    %v319 = vadd.f32 %v95, %v318
    %v320 = vpop.f32.mrf.mxu0
    %v321 = vadd.f32 %v99, %v320
    %322 = vdwg.mxu0
    %323 = vst [vmem:[#allocation2] sm:$0xff] %v212
    %324 = vst [vmem:[#allocation2 + $0x8] sm:$0xff] %v214
    %325 = vst [vmem:[#allocation2 + $0x10] sm:$0xff] %v285
    %326 = vst [vmem:[#allocation2 + $0x18] sm:$0xff] %v287
    %327 = vst [vmem:[#allocation2 + $0x20] sm:$0xff] %v216
    %328 = vst [vmem:[#allocation2 + $0x28] sm:$0xff] %v218
    %329 = vst [vmem:[#allocation2 + $0x30] sm:$0xff] %v289
    %330 = vst [vmem:[#allocation2 + $0x38] sm:$0xff] %v291
    %331 = vst [vmem:[#allocation2 + $0x40] sm:$0xff] %v222
    %332 = vst [vmem:[#allocation2 + $0x48] sm:$0xff] %v224
    %333 = vst [vmem:[#allocation2 + $0x50] sm:$0xff] %v295
    %334 = vst [vmem:[#allocation2 + $0x58] sm:$0xff] %v297
    %335 = vst [vmem:[#allocation2 + $0x60] sm:$0xff] %v226
    %336 = vst [vmem:[#allocation2 + $0x68] sm:$0xff] %v228
    %337 = vst [vmem:[#allocation2 + $0x70] sm:$0xff] %v299
    %338 = vst [vmem:[#allocation2 + $0x78] sm:$0xff] %v301
    %339 = vst [vmem:[#allocation2 + $0x80] sm:$0xff] %v232
    %340 = vst [vmem:[#allocation2 + $0x88] sm:$0xff] %v234
    %341 = vst [vmem:[#allocation2 + $0x90] sm:$0xff] %v305
    %342 = vst [vmem:[#allocation2 + $0x98] sm:$0xff] %v307
    %343 = vst [vmem:[#allocation2 + $0xa0] sm:$0xff] %v236
    %344 = vst [vmem:[#allocation2 + $0xa8] sm:$0xff] %v238
    %345 = vst [vmem:[#allocation2 + $0xb0] sm:$0xff] %v309
    %346 = vst [vmem:[#allocation2 + $0xb8] sm:$0xff] %v311
    %347 = vst [vmem:[#allocation2 + $0xc0] sm:$0xff] %v242
    %348 = vst [vmem:[#allocation2 + $0xc8] sm:$0xff] %v244
    %349 = vst [vmem:[#allocation2 + $0xd0] sm:$0xff] %v315
    %350 = vst [vmem:[#allocation2 + $0xd8] sm:$0xff] %v317
    %351 = vst [vmem:[#allocation2 + $0xe0] sm:$0xff] %v246
    %352 = vst [vmem:[#allocation2 + $0xe8] sm:$0xff] %v248
    %353 = vst [vmem:[#allocation2 + $0xf0] sm:$0xff] %v319
    %354 = vst [vmem:[#allocation2 + $0xf8] sm:$0xff] %v321
    %v355 = vld [vmem:[#allocation2] sm:$0xff]
    %v356 = vld [vmem:[#allocation2 + $0x8] sm:$0xff]
    %v357 = vld [vmem:[#allocation2 + $0x10] sm:$0xff]
    %v358 = vld [vmem:[#allocation2 + $0x18] sm:$0xff]
    %v359 = vld [vmem:[#allocation7] sm:$0xff]
    %v360 = vld [vmem:[#allocation7 + $0x8] sm:$0xff]
    %v361 = vld [vmem:[#allocation7 + $0x10] sm:$0xff]
    %v362 = vld [vmem:[#allocation7 + $0x18] sm:$0xff]
    %v363 = vld [vmem:[#allocation7 + $0x20] sm:$0xff]
    %v364 = vld [vmem:[#allocation7 + $0x28] sm:$0xff]
    %v365 = vld [vmem:[#allocation7 + $0x30] sm:$0xff]
    %v366 = vld [vmem:[#allocation7 + $0x38] sm:$0xff]
    %v367 = vld [vmem:[#allocation7 + $0x40] sm:$0xff]
    %v368 = vld [vmem:[#allocation7 + $0x48] sm:$0xff]
    %v369 = vld [vmem:[#allocation7 + $0x50] sm:$0xff]
    %v370 = vld [vmem:[#allocation7 + $0x58] sm:$0xff]
    %v371 = vld [vmem:[#allocation7 + $0x60] sm:$0xff]
    %v372 = vld [vmem:[#allocation7 + $0x68] sm:$0xff]
    %v373 = vld [vmem:[#allocation7 + $0x70] sm:$0xff]
    %v374 = vld [vmem:[#allocation7 + $0x78] sm:$0xff]
    %v375 = vld [vmem:[#allocation7 + $0x80] sm:$0xff]
    %v376 = vld [vmem:[#allocation7 + $0x88] sm:$0xff]
    %v377 = vld [vmem:[#allocation7 + $0x90] sm:$0xff]
    %v378 = vld [vmem:[#allocation7 + $0x98] sm:$0xff]
    %v379 = vld [vmem:[#allocation7 + $0xa0] sm:$0xff]
    %v380 = vld [vmem:[#allocation7 + $0xa8] sm:$0xff]
    %v381 = vld [vmem:[#allocation7 + $0xb0] sm:$0xff]
    %v382 = vld [vmem:[#allocation7 + $0xb8] sm:$0xff]
    %v383 = vld [vmem:[#allocation7 + $0xc0] sm:$0xff]
    %v384 = vld [vmem:[#allocation7 + $0xc8] sm:$0xff]
    %v385 = vld [vmem:[#allocation7 + $0xd0] sm:$0xff]
    %v386 = vld [vmem:[#allocation7 + $0xd8] sm:$0xff]
    %v387 = vld [vmem:[#allocation7 + $0xe0] sm:$0xff]
    %v388 = vld [vmem:[#allocation7 + $0xe8] sm:$0xff]
    %v389 = vld [vmem:[#allocation7 + $0xf0] sm:$0xff]
    %v390 = vld [vmem:[#allocation7 + $0xf8] sm:$0xff]
    %v423 = vunpack.c.l.b16 %v359
    %v424 = vunpack.c.h.b16 %v359
    %v425 = vunpack.c.l.b16 %v360
    %v426 = vunpack.c.h.b16 %v360
    %v427 = vunpack.c.l.b16 %v361
    %v428 = vunpack.c.h.b16 %v361
    %v429 = vunpack.c.l.b16 %v362
    %v430 = vunpack.c.h.b16 %v362
    %v431 = vunpack.c.l.b16 %v363
    %v432 = vunpack.c.h.b16 %v363
    %v433 = vunpack.c.l.b16 %v364
    %v434 = vunpack.c.h.b16 %v364
    %v435 = vunpack.c.l.b16 %v365
    %v436 = vunpack.c.h.b16 %v365
    %v437 = vunpack.c.l.b16 %v366
    %v438 = vunpack.c.h.b16 %v366
    %v439 = vunpack.c.l.b16 %v367
    %v440 = vunpack.c.h.b16 %v367
    %v441 = vunpack.c.l.b16 %v368
    %v442 = vunpack.c.h.b16 %v368
    %v443 = vunpack.c.l.b16 %v369
    %v444 = vunpack.c.h.b16 %v369
    %v445 = vunpack.c.l.b16 %v370
    %v446 = vunpack.c.h.b16 %v370
    %v447 = vunpack.c.l.b16 %v371
    %v448 = vunpack.c.h.b16 %v371
    %v449 = vunpack.c.l.b16 %v372
    %v450 = vunpack.c.h.b16 %v372
    %v451 = vunpack.c.l.b16 %v373
    %v452 = vunpack.c.h.b16 %v373
    %v453 = vunpack.c.l.b16 %v374
    %v454 = vunpack.c.h.b16 %v374
    %v455 = vunpack.c.l.b16 %v375
    %v456 = vunpack.c.h.b16 %v375
    %v457 = vunpack.c.l.b16 %v376
    %v458 = vunpack.c.h.b16 %v376
    %v459 = vunpack.c.l.b16 %v377
    %v460 = vunpack.c.h.b16 %v377
    %v461 = vunpack.c.l.b16 %v378
    %v462 = vunpack.c.h.b16 %v378
    %v463 = vunpack.c.l.b16 %v379
    %v464 = vunpack.c.h.b16 %v379
    %v465 = vunpack.c.l.b16 %v380
    %v466 = vunpack.c.h.b16 %v380
    %v467 = vunpack.c.l.b16 %v381
    %v468 = vunpack.c.h.b16 %v381
    %v469 = vunpack.c.l.b16 %v382
    %v470 = vunpack.c.h.b16 %v382
    %v471 = vunpack.c.l.b16 %v383
    %v472 = vunpack.c.h.b16 %v383
    %v473 = vunpack.c.l.b16 %v384
    %v474 = vunpack.c.h.b16 %v384
    %v475 = vunpack.c.l.b16 %v385
    %v476 = vunpack.c.h.b16 %v385
    %v477 = vunpack.c.l.b16 %v386
    %v478 = vunpack.c.h.b16 %v386
    %v479 = vunpack.c.l.b16 %v387
    %v480 = vunpack.c.h.b16 %v387
    %v481 = vunpack.c.l.b16 %v388
    %v482 = vunpack.c.h.b16 %v388
    %v483 = vunpack.c.l.b16 %v389
    %v484 = vunpack.c.h.b16 %v389
    %v485 = vunpack.c.l.b16 %v390
    %v486 = vunpack.c.h.b16 %v390
    %v487 = vpack.c.b16 %v427, %v423
    %v488 = vpack.c.b16 %v428, %v424
    %v489 = vpack.c.b16 %v429, %v425
    %v490 = vpack.c.b16 %v430, %v426
    %v491 = vpack.c.b16 %v435, %v431
    %v492 = vpack.c.b16 %v436, %v432
    %v493 = vpack.c.b16 %v437, %v433
    %v494 = vpack.c.b16 %v438, %v434
    %v495 = vpack.c.b16 %v443, %v439
    %v496 = vpack.c.b16 %v444, %v440
    %v497 = vpack.c.b16 %v445, %v441
    %v498 = vpack.c.b16 %v446, %v442
    %v499 = vpack.c.b16 %v451, %v447
    %v500 = vpack.c.b16 %v452, %v448
    %v501 = vpack.c.b16 %v453, %v449
    %v502 = vpack.c.b16 %v454, %v450
    %v503 = vpack.c.b16 %v459, %v455
    %v504 = vpack.c.b16 %v460, %v456
    %v505 = vpack.c.b16 %v461, %v457
    %v506 = vpack.c.b16 %v462, %v458
    %v507 = vpack.c.b16 %v467, %v463
    %v508 = vpack.c.b16 %v468, %v464
    %v509 = vpack.c.b16 %v469, %v465
    %v510 = vpack.c.b16 %v470, %v466
    %v511 = vpack.c.b16 %v475, %v471
    %v512 = vpack.c.b16 %v476, %v472
    %v513 = vpack.c.b16 %v477, %v473
    %v514 = vpack.c.b16 %v478, %v474
    %v515 = vpack.c.b16 %v483, %v479
    %v516 = vpack.c.b16 %v484, %v480
    %v517 = vpack.c.b16 %v485, %v481
    %v518 = vpack.c.b16 %v486, %v482
    %551 = vmatprep.subr.bf16.mxu0 %v516
    %552 = vmatpush1.bf16.msra.mxu0 %v515
    %553 = vmatprep.subr.bf16.mxu0 %v512
    %554 = vmatpush1.bf16.msra.mxu0 %v511
    %555 = vmatprep.subr.bf16.mxu0 %v508
    %556 = vmatpush1.bf16.msra.mxu0 %v507
    %557 = vmatprep.subr.bf16.mxu0 %v504
    %558 = vmatpush1.bf16.msra.mxu0 %v503
    %559 = vmatprep.subr.bf16.mxu0 %v500
    %560 = vmatpush1.bf16.msra.mxu0 %v499
    %561 = vmatprep.subr.bf16.mxu0 %v496
    %562 = vmatpush1.bf16.msra.mxu0 %v495
    %563 = vmatprep.subr.bf16.mxu0 %v492
    %564 = vmatpush1.bf16.msra.mxu0 %v491
    %565 = vmatprep.subr.bf16.mxu0 %v488
    %566 = vmatpush1.bf16.msra.mxu0 %v487
    %567 = vmatprep.subr.bf16.mxu0 0
    %568 = vmatpush2.bf16.msra.mxu0 0
    %569 = vmatprep.subr.bf16.mxu0 0
    %570 = vmatpush2.bf16.msra.mxu0 0
    %571 = vmatprep.subr.bf16.mxu0 0
    %572 = vmatpush2.bf16.msra.mxu0 0
    %573 = vmatprep.subr.bf16.mxu0 0
    %574 = vmatpush2.bf16.msra.mxu0 0
    %575 = vmatprep.subr.bf16.mxu0 0
    %576 = vmatpush2.bf16.msra.mxu0 0
    %577 = vmatprep.subr.bf16.mxu0 0
    %578 = vmatpush2.bf16.msra.mxu0 0
    %579 = vmatprep.subr.bf16.mxu0 0
    %580 = vmatpush2.bf16.msra.mxu0 0
    %581 = vmatprep.subr.bf16.mxu0 0
    %582 = vmatpush2.bf16.msra.mxu0 0
    %583 = vmatprep.mubr.bf16.mxu0 0
    %584 = vmatmul.mubr.bf16.gmra.mxu0 0
    %v585 = vpop.f32.mrf.mxu0
    %v586 = vadd.f32 0.0, %v585
    %v587 = vpop.f32.mrf.mxu0
    %v588 = vadd.f32 0.0, %v587
    %v589 = vpop.f32.mrf.mxu0
    %v590 = vpop.f32.mrf.mxu0
    %591 = vdwg.mxu0
    %592 = vmatprep.subr.bf16.mxu0 %v518
    %593 = vmatpush1.bf16.msra.mxu0 %v517
    %594 = vmatprep.subr.bf16.mxu0 %v514
    %595 = vmatpush1.bf16.msra.mxu0 %v513
    %596 = vmatprep.subr.bf16.mxu0 %v510
    %597 = vmatpush1.bf16.msra.mxu0 %v509
    %598 = vmatprep.subr.bf16.mxu0 %v506
    %599 = vmatpush1.bf16.msra.mxu0 %v505
    %600 = vmatprep.subr.bf16.mxu0 %v502
    %601 = vmatpush1.bf16.msra.mxu0 %v501
    %602 = vmatprep.subr.bf16.mxu0 %v498
    %603 = vmatpush1.bf16.msra.mxu0 %v497
    %604 = vmatprep.subr.bf16.mxu0 %v494
    %605 = vmatpush1.bf16.msra.mxu0 %v493
    %606 = vmatprep.subr.bf16.mxu0 %v490
    %607 = vmatpush1.bf16.msra.mxu0 %v489
    %608 = vmatprep.subr.bf16.mxu0 0
    %609 = vmatpush2.bf16.msra.mxu0 0
    %610 = vmatprep.subr.bf16.mxu0 0
    %611 = vmatpush2.bf16.msra.mxu0 0
    %612 = vmatprep.subr.bf16.mxu0 0
    %613 = vmatpush2.bf16.msra.mxu0 0
    %614 = vmatprep.subr.bf16.mxu0 0
    %615 = vmatpush2.bf16.msra.mxu0 0
    %616 = vmatprep.subr.bf16.mxu0 0
    %617 = vmatpush2.bf16.msra.mxu0 0
    %618 = vmatprep.subr.bf16.mxu0 0
    %619 = vmatpush2.bf16.msra.mxu0 0
    %620 = vmatprep.subr.bf16.mxu0 0
    %621 = vmatpush2.bf16.msra.mxu0 0
    %622 = vmatprep.subr.bf16.mxu0 0
    %623 = vmatpush2.bf16.msra.mxu0 0
    %624 = vmatprep.mubr.bf16.mxu0 0
    %625 = vmatmul.mubr.bf16.gmra.mxu0 0
    %v626 = vpop.f32.mrf.mxu0
    %v627 = vadd.f32 0.0, %v626
    %v628 = vpop.f32.mrf.mxu0
    %v629 = vadd.f32 0.0, %v628
    %v630 = vpop.f32.mrf.mxu0
    %v631 = vpop.f32.mrf.mxu0
    %632 = vdwg.mxu0
    %v633 = vadd.f32 %v355, %v586
    %v634 = vadd.f32 %v356, %v588
    %v635 = vadd.f32 %v357, %v627
    %v636 = vadd.f32 %v358, %v629
    %v637 = vxor.u32 %v633, 2147483648
    %v638 = vxor.u32 %v634, 2147483648
    %v639 = vxor.u32 %v635, 2147483648
    %v640 = vmul.f32 %v637, 1.442695
    %v641 = vpow.pop %v640
    %v642 = vmul.f32 %v638, 1.442695
    %v643 = vpow.pop %v642
    %v644 = vmul.f32 %v639, 1.442695
    %v645 = vpow.pop %v644
    %v646 = vadd.f32 %v641, 1.0
    %v647 = vadd.f32 %v643, 1.0
    %v648 = vadd.f32 %v645, 1.0
    %v649 = vrcp.pop %v646
    %v650 = vmul.f32 1.0, %v649
    %v651 = vrcp.pop %v647
    %v652 = vmul.f32 1.0, %v651
    %v653 = vrcp.pop %v648
    %v654 = vmul.f32 1.0, %v653
    %v655 = vtanh.pop %v636
    %v656 = vmul.f32 %v652, 0.0
    %v657 = vmul.f32 %v650, %v655
    %v658 = vadd.f32 %v656, %v657
    %v659 = vtanh.pop %v658
    %v660 = vmul.f32 %v654, %v659
    %v661 = vpack.c.bf16 %v660, %v660
    %662 = vst [vmem:[#allocation3] sm:$0xf] %v661
    %v663 = vld [vmem:[#allocation2 + $0x20] sm:$0xff]
    %v664 = vld [vmem:[#allocation2 + $0x28] sm:$0xff]
    %v665 = vld [vmem:[#allocation2 + $0x30] sm:$0xff]
    %v666 = vld [vmem:[#allocation2 + $0x38] sm:$0xff]
    %v667 = vld [vmem:[#allocation7] sm:$0xff]
    %v668 = vld [vmem:[#allocation7 + $0x8] sm:$0xff]
    %v669 = vld [vmem:[#allocation7 + $0x10] sm:$0xff]
    %v670 = vld [vmem:[#allocation7 + $0x18] sm:$0xff]
    %v671 = vld [vmem:[#allocation7 + $0x20] sm:$0xff]
    %v672 = vld [vmem:[#allocation7 + $0x28] sm:$0xff]
    %v673 = vld [vmem:[#allocation7 + $0x30] sm:$0xff]
    %v674 = vld [vmem:[#allocation7 + $0x38] sm:$0xff]
    %v675 = vld [vmem:[#allocation7 + $0x40] sm:$0xff]
    %v676 = vld [vmem:[#allocation7 + $0x48] sm:$0xff]
    %v677 = vld [vmem:[#allocation7 + $0x50] sm:$0xff]
    %v678 = vld [vmem:[#allocation7 + $0x58] sm:$0xff]
    %v679 = vld [vmem:[#allocation7 + $0x60] sm:$0xff]
    %v680 = vld [vmem:[#allocation7 + $0x68] sm:$0xff]
    %v681 = vld [vmem:[#allocation7 + $0x70] sm:$0xff]
    %v682 = vld [vmem:[#allocation7 + $0x78] sm:$0xff]
    %v683 = vld [vmem:[#allocation7 + $0x80] sm:$0xff]
    %v684 = vld [vmem:[#allocation7 + $0x88] sm:$0xff]
    %v685 = vld [vmem:[#allocation7 + $0x90] sm:$0xff]
    %v686 = vld [vmem:[#allocation7 + $0x98] sm:$0xff]
    %v687 = vld [vmem:[#allocation7 + $0xa0] sm:$0xff]
    %v688 = vld [vmem:[#allocation7 + $0xa8] sm:$0xff]
    %v689 = vld [vmem:[#allocation7 + $0xb0] sm:$0xff]
    %v690 = vld [vmem:[#allocation7 + $0xb8] sm:$0xff]
    %v691 = vld [vmem:[#allocation7 + $0xc0] sm:$0xff]
    %v692 = vld [vmem:[#allocation7 + $0xc8] sm:$0xff]
    %v693 = vld [vmem:[#allocation7 + $0xd0] sm:$0xff]
    %v694 = vld [vmem:[#allocation7 + $0xd8] sm:$0xff]
    %v695 = vld [vmem:[#allocation7 + $0xe0] sm:$0xff]
    %v696 = vld [vmem:[#allocation7 + $0xe8] sm:$0xff]
    %v697 = vld [vmem:[#allocation7 + $0xf0] sm:$0xff]
    %v698 = vld [vmem:[#allocation7 + $0xf8] sm:$0xff]
    %v731 = vunpack.c.l.b16 %v667
    %v732 = vunpack.c.h.b16 %v667
    %v733 = vunpack.c.l.b16 %v668
    %v734 = vunpack.c.h.b16 %v668
    %v735 = vunpack.c.l.b16 %v669
    %v736 = vunpack.c.h.b16 %v669
    %v737 = vunpack.c.l.b16 %v670
    %v738 = vunpack.c.h.b16 %v670
    %v739 = vunpack.c.l.b16 %v671
    %v740 = vunpack.c.h.b16 %v671
    %v741 = vunpack.c.l.b16 %v672
    %v742 = vunpack.c.h.b16 %v672
    %v743 = vunpack.c.l.b16 %v673
    %v744 = vunpack.c.h.b16 %v673
    %v745 = vunpack.c.l.b16 %v674
    %v746 = vunpack.c.h.b16 %v674
    %v747 = vunpack.c.l.b16 %v675
    %v748 = vunpack.c.h.b16 %v675
    %v749 = vunpack.c.l.b16 %v676
    %v750 = vunpack.c.h.b16 %v676
    %v751 = vunpack.c.l.b16 %v677
    %v752 = vunpack.c.h.b16 %v677
    %v753 = vunpack.c.l.b16 %v678
    %v754 = vunpack.c.h.b16 %v678
    %v755 = vunpack.c.l.b16 %v679
    %v756 = vunpack.c.h.b16 %v679
    %v757 = vunpack.c.l.b16 %v680
    %v758 = vunpack.c.h.b16 %v680
    %v759 = vunpack.c.l.b16 %v681
    %v760 = vunpack.c.h.b16 %v681
    %v761 = vunpack.c.l.b16 %v682
    %v762 = vunpack.c.h.b16 %v682
    %v763 = vunpack.c.l.b16 %v683
    %v764 = vunpack.c.h.b16 %v683
    %v765 = vunpack.c.l.b16 %v684
    %v766 = vunpack.c.h.b16 %v684
    %v767 = vunpack.c.l.b16 %v685
    %v768 = vunpack.c.h.b16 %v685
    %v769 = vunpack.c.l.b16 %v686
    %v770 = vunpack.c.h.b16 %v686
    %v771 = vunpack.c.l.b16 %v687
    %v772 = vunpack.c.h.b16 %v687
    %v773 = vunpack.c.l.b16 %v688
    %v774 = vunpack.c.h.b16 %v688
    %v775 = vunpack.c.l.b16 %v689
    %v776 = vunpack.c.h.b16 %v689
    %v777 = vunpack.c.l.b16 %v690
    %v778 = vunpack.c.h.b16 %v690
    %v779 = vunpack.c.l.b16 %v691
    %v780 = vunpack.c.h.b16 %v691
    %v781 = vunpack.c.l.b16 %v692
    %v782 = vunpack.c.h.b16 %v692
    %v783 = vunpack.c.l.b16 %v693
    %v784 = vunpack.c.h.b16 %v693
    %v785 = vunpack.c.l.b16 %v694
    %v786 = vunpack.c.h.b16 %v694
    %v787 = vunpack.c.l.b16 %v695
    %v788 = vunpack.c.h.b16 %v695
    %v789 = vunpack.c.l.b16 %v696
    %v790 = vunpack.c.h.b16 %v696
    %v791 = vunpack.c.l.b16 %v697
    %v792 = vunpack.c.h.b16 %v697
    %v793 = vunpack.c.l.b16 %v698
    %v794 = vunpack.c.h.b16 %v698
    %v795 = vpack.c.b16 %v735, %v731
    %v796 = vpack.c.b16 %v736, %v732
    %v797 = vpack.c.b16 %v737, %v733
    %v798 = vpack.c.b16 %v738, %v734
    %v799 = vpack.c.b16 %v743, %v739
    %v800 = vpack.c.b16 %v744, %v740
    %v801 = vpack.c.b16 %v745, %v741
    %v802 = vpack.c.b16 %v746, %v742
    %v803 = vpack.c.b16 %v751, %v747
    %v804 = vpack.c.b16 %v752, %v748
    %v805 = vpack.c.b16 %v753, %v749
    %v806 = vpack.c.b16 %v754, %v750
    %v807 = vpack.c.b16 %v759, %v755
    %v808 = vpack.c.b16 %v760, %v756
    %v809 = vpack.c.b16 %v761, %v757
    %v810 = vpack.c.b16 %v762, %v758
    %v811 = vpack.c.b16 %v767, %v763
    %v812 = vpack.c.b16 %v768, %v764
    %v813 = vpack.c.b16 %v769, %v765
    %v814 = vpack.c.b16 %v770, %v766
    %v815 = vpack.c.b16 %v775, %v771
    %v816 = vpack.c.b16 %v776, %v772
    %v817 = vpack.c.b16 %v777, %v773
    %v818 = vpack.c.b16 %v778, %v774
    %v819 = vpack.c.b16 %v783, %v779
    %v820 = vpack.c.b16 %v784, %v780
    %v821 = vpack.c.b16 %v785, %v781
    %v822 = vpack.c.b16 %v786, %v782
    %v823 = vpack.c.b16 %v791, %v787
    %v824 = vpack.c.b16 %v792, %v788
    %v825 = vpack.c.b16 %v793, %v789
    %v826 = vpack.c.b16 %v794, %v790
    %859 = vmatprep.subr.bf16.mxu0 %v824
    %860 = vmatpush1.bf16.msra.mxu0 %v823
    %861 = vmatprep.subr.bf16.mxu0 %v820
    %862 = vmatpush1.bf16.msra.mxu0 %v819
    %863 = vmatprep.subr.bf16.mxu0 %v816
    %864 = vmatpush1.bf16.msra.mxu0 %v815
    %865 = vmatprep.subr.bf16.mxu0 %v812
    %866 = vmatpush1.bf16.msra.mxu0 %v811
    %867 = vmatprep.subr.bf16.mxu0 %v808
    %868 = vmatpush1.bf16.msra.mxu0 %v807
    %869 = vmatprep.subr.bf16.mxu0 %v804
    %870 = vmatpush1.bf16.msra.mxu0 %v803
    %871 = vmatprep.subr.bf16.mxu0 %v800
    %872 = vmatpush1.bf16.msra.mxu0 %v799
    %873 = vmatprep.subr.bf16.mxu0 %v796
    %874 = vmatpush1.bf16.msra.mxu0 %v795
    %875 = vmatprep.subr.bf16.mxu0 0
    %876 = vmatpush2.bf16.msra.mxu0 0
    %877 = vmatprep.subr.bf16.mxu0 0
    %878 = vmatpush2.bf16.msra.mxu0 0
    %879 = vmatprep.subr.bf16.mxu0 0
    %880 = vmatpush2.bf16.msra.mxu0 0
    %881 = vmatprep.subr.bf16.mxu0 0
    %882 = vmatpush2.bf16.msra.mxu0 0
    %883 = vmatprep.subr.bf16.mxu0 0
    %884 = vmatpush2.bf16.msra.mxu0 0
    %885 = vmatprep.subr.bf16.mxu0 0
    %886 = vmatpush2.bf16.msra.mxu0 0
    %887 = vmatprep.subr.bf16.mxu0 0
    %888 = vmatpush2.bf16.msra.mxu0 0
    %889 = vmatprep.subr.bf16.mxu0 0
    %890 = vmatpush2.bf16.msra.mxu0 0
    %891 = vmatprep.mubr.bf16.mxu0 0
    %892 = vmatmul.mubr.bf16.gmra.mxu0 %v661
    %v893 = vpop.f32.mrf.mxu0
    %v894 = vadd.f32 0.0, %v893
    %v895 = vpop.f32.mrf.mxu0
    %v896 = vadd.f32 0.0, %v895
    %v897 = vpop.f32.mrf.mxu0
    %v898 = vpop.f32.mrf.mxu0
    %899 = vdwg.mxu0
    %900 = vmatprep.subr.bf16.mxu0 %v826
    %901 = vmatpush1.bf16.msra.mxu0 %v825
    %902 = vmatprep.subr.bf16.mxu0 %v822
    %903 = vmatpush1.bf16.msra.mxu0 %v821
    %904 = vmatprep.subr.bf16.mxu0 %v818
    %905 = vmatpush1.bf16.msra.mxu0 %v817
    %906 = vmatprep.subr.bf16.mxu0 %v814
    %907 = vmatpush1.bf16.msra.mxu0 %v813
    %908 = vmatprep.subr.bf16.mxu0 %v810
    %909 = vmatpush1.bf16.msra.mxu0 %v809
    %910 = vmatprep.subr.bf16.mxu0 %v806
    %911 = vmatpush1.bf16.msra.mxu0 %v805
    %912 = vmatprep.subr.bf16.mxu0 %v802
    %913 = vmatpush1.bf16.msra.mxu0 %v801
    %914 = vmatprep.subr.bf16.mxu0 %v798
    %915 = vmatpush1.bf16.msra.mxu0 %v797
    %916 = vmatprep.subr.bf16.mxu0 0
    %917 = vmatpush2.bf16.msra.mxu0 0
    %918 = vmatprep.subr.bf16.mxu0 0
    %919 = vmatpush2.bf16.msra.mxu0 0
    %920 = vmatprep.subr.bf16.mxu0 0
    %921 = vmatpush2.bf16.msra.mxu0 0
    %922 = vmatprep.subr.bf16.mxu0 0
    %923 = vmatpush2.bf16.msra.mxu0 0
    %924 = vmatprep.subr.bf16.mxu0 0
    %925 = vmatpush2.bf16.msra.mxu0 0
    %926 = vmatprep.subr.bf16.mxu0 0
    %927 = vmatpush2.bf16.msra.mxu0 0
    %928 = vmatprep.subr.bf16.mxu0 0
    %929 = vmatpush2.bf16.msra.mxu0 0
    %930 = vmatprep.subr.bf16.mxu0 0
    %931 = vmatpush2.bf16.msra.mxu0 0
    %932 = vmatprep.mubr.bf16.mxu0 0
    %933 = vmatmul.mubr.bf16.gmra.mxu0 %v661
    %v934 = vpop.f32.mrf.mxu0
    %v935 = vadd.f32 0.0, %v934
    %v936 = vpop.f32.mrf.mxu0
    %v937 = vadd.f32 0.0, %v936
    %v938 = vpop.f32.mrf.mxu0
    %v939 = vpop.f32.mrf.mxu0
    %940 = vdwg.mxu0
    %v941 = vadd.f32 %v663, %v894
    %v942 = vadd.f32 %v664, %v896
    %v943 = vadd.f32 %v665, %v935
    %v944 = vadd.f32 %v666, %v937
    %v945 = vxor.u32 %v941, 2147483648
    %v946 = vxor.u32 %v942, 2147483648
    %v947 = vxor.u32 %v943, 2147483648
    %v948 = vmul.f32 %v945, 1.442695
    %v949 = vpow.pop %v948
    %v950 = vmul.f32 %v946, 1.442695
    %v951 = vpow.pop %v950
    %v952 = vmul.f32 %v947, 1.442695
    %v953 = vpow.pop %v952
    %v954 = vadd.f32 %v949, 1.0
    %v955 = vadd.f32 %v951, 1.0
    %v956 = vadd.f32 %v953, 1.0
    %v957 = vrcp.pop %v954
    %v958 = vmul.f32 1.0, %v957
    %v959 = vrcp.pop %v955
    %v960 = vmul.f32 1.0, %v959
    %v961 = vrcp.pop %v956
    %v962 = vmul.f32 1.0, %v961
    %v963 = vtanh.pop %v944
    %v964 = vmul.f32 %v960, %v658
    %v965 = vmul.f32 %v958, %v963
    %v966 = vadd.f32 %v964, %v965
    %v967 = vtanh.pop %v966
    %v968 = vmul.f32 %v962, %v967
    %v969 = vpack.c.bf16 %v968, %v968
    %970 = vst [vmem:[#allocation3 + $0x4] sm:$0xf] %v969
    %v971 = vld [vmem:[#allocation2 + $0x40] sm:$0xff]
    %v972 = vld [vmem:[#allocation2 + $0x48] sm:$0xff]
    %v973 = vld [vmem:[#allocation2 + $0x50] sm:$0xff]
    %v974 = vld [vmem:[#allocation2 + $0x58] sm:$0xff]
    %v975 = vld [vmem:[#allocation7] sm:$0xff]
    %v976 = vld [vmem:[#allocation7 + $0x8] sm:$0xff]
    %v977 = vld [vmem:[#allocation7 + $0x10] sm:$0xff]
    %v978 = vld [vmem:[#allocation7 + $0x18] sm:$0xff]
    %v979 = vld [vmem:[#allocation7 + $0x20] sm:$0xff]
    %v980 = vld [vmem:[#allocation7 + $0x28] sm:$0xff]
    %v981 = vld [vmem:[#allocation7 + $0x30] sm:$0xff]
    %v982 = vld [vmem:[#allocation7 + $0x38] sm:$0xff]
    %v983 = vld [vmem:[#allocation7 + $0x40] sm:$0xff]
    %v984 = vld [vmem:[#allocation7 + $0x48] sm:$0xff]
    %v985 = vld [vmem:[#allocation7 + $0x50] sm:$0xff]
    %v986 = vld [vmem:[#allocation7 + $0x58] sm:$0xff]
    %v987 = vld [vmem:[#allocation7 + $0x60] sm:$0xff]
    %v988 = vld [vmem:[#allocation7 + $0x68] sm:$0xff]
    %v989 = vld [vmem:[#allocation7 + $0x70] sm:$0xff]
    %v990 = vld [vmem:[#allocation7 + $0x78] sm:$0xff]
    %v991 = vld [vmem:[#allocation7 + $0x80] sm:$0xff]
    %v992 = vld [vmem:[#allocation7 + $0x88] sm:$0xff]
    %v993 = vld [vmem:[#allocation7 + $0x90] sm:$0xff]
    %v994 = vld [vmem:[#allocation7 + $0x98] sm:$0xff]
    %v995 = vld [vmem:[#allocation7 + $0xa0] sm:$0xff]
    %v996 = vld [vmem:[#allocation7 + $0xa8] sm:$0xff]
    %v997 = vld [vmem:[#allocation7 + $0xb0] sm:$0xff]
    %v998 = vld [vmem:[#allocation7 + $0xb8] sm:$0xff]
    %v999 = vld [vmem:[#allocation7 + $0xc0] sm:$0xff]
    %v1000 = vld [vmem:[#allocation7 + $0xc8] sm:$0xff]
    %v1001 = vld [vmem:[#allocation7 + $0xd0] sm:$0xff]
    %v1002 = vld [vmem:[#allocation7 + $0xd8] sm:$0xff]
    %v1003 = vld [vmem:[#allocation7 + $0xe0] sm:$0xff]
    %v1004 = vld [vmem:[#allocation7 + $0xe8] sm:$0xff]
    %v1005 = vld [vmem:[#allocation7 + $0xf0] sm:$0xff]
    %v1006 = vld [vmem:[#allocation7 + $0xf8] sm:$0xff]
    %v1039 = vunpack.c.l.b16 %v975
    %v1040 = vunpack.c.h.b16 %v975
    %v1041 = vunpack.c.l.b16 %v976
    %v1042 = vunpack.c.h.b16 %v976
    %v1043 = vunpack.c.l.b16 %v977
    %v1044 = vunpack.c.h.b16 %v977
    %v1045 = vunpack.c.l.b16 %v978
    %v1046 = vunpack.c.h.b16 %v978
    %v1047 = vunpack.c.l.b16 %v979
    %v1048 = vunpack.c.h.b16 %v979
    %v1049 = vunpack.c.l.b16 %v980
    %v1050 = vunpack.c.h.b16 %v980
    %v1051 = vunpack.c.l.b16 %v981
    %v1052 = vunpack.c.h.b16 %v981
    %v1053 = vunpack.c.l.b16 %v982
    %v1054 = vunpack.c.h.b16 %v982
    %v1055 = vunpack.c.l.b16 %v983
    %v1056 = vunpack.c.h.b16 %v983
    %v1057 = vunpack.c.l.b16 %v984
    %v1058 = vunpack.c.h.b16 %v984
    %v1059 = vunpack.c.l.b16 %v985
    %v1060 = vunpack.c.h.b16 %v985
    %v1061 = vunpack.c.l.b16 %v986
    %v1062 = vunpack.c.h.b16 %v986
    %v1063 = vunpack.c.l.b16 %v987
    %v1064 = vunpack.c.h.b16 %v987
    %v1065 = vunpack.c.l.b16 %v988
    %v1066 = vunpack.c.h.b16 %v988
    %v1067 = vunpack.c.l.b16 %v989
    %v1068 = vunpack.c.h.b16 %v989
    %v1069 = vunpack.c.l.b16 %v990
    %v1070 = vunpack.c.h.b16 %v990
    %v1071 = vunpack.c.l.b16 %v991
    %v1072 = vunpack.c.h.b16 %v991
    %v1073 = vunpack.c.l.b16 %v992
    %v1074 = vunpack.c.h.b16 %v992
    %v1075 = vunpack.c.l.b16 %v993
    %v1076 = vunpack.c.h.b16 %v993
    %v1077 = vunpack.c.l.b16 %v994
    %v1078 = vunpack.c.h.b16 %v994
    %v1079 = vunpack.c.l.b16 %v995
    %v1080 = vunpack.c.h.b16 %v995
    %v1081 = vunpack.c.l.b16 %v996
    %v1082 = vunpack.c.h.b16 %v996
    %v1083 = vunpack.c.l.b16 %v997
    %v1084 = vunpack.c.h.b16 %v997
    %v1085 = vunpack.c.l.b16 %v998
    %v1086 = vunpack.c.h.b16 %v998
    %v1087 = vunpack.c.l.b16 %v999
    %v1088 = vunpack.c.h.b16 %v999
    %v1089 = vunpack.c.l.b16 %v1000
    %v1090 = vunpack.c.h.b16 %v1000
    %v1091 = vunpack.c.l.b16 %v1001
    %v1092 = vunpack.c.h.b16 %v1001
    %v1093 = vunpack.c.l.b16 %v1002
    %v1094 = vunpack.c.h.b16 %v1002
    %v1095 = vunpack.c.l.b16 %v1003
    %v1096 = vunpack.c.h.b16 %v1003
    %v1097 = vunpack.c.l.b16 %v1004
    %v1098 = vunpack.c.h.b16 %v1004
    %v1099 = vunpack.c.l.b16 %v1005
    %v1100 = vunpack.c.h.b16 %v1005
    %v1101 = vunpack.c.l.b16 %v1006
    %v1102 = vunpack.c.h.b16 %v1006
    %v1103 = vpack.c.b16 %v1043, %v1039
    %v1104 = vpack.c.b16 %v1044, %v1040
    %v1105 = vpack.c.b16 %v1045, %v1041
    %v1106 = vpack.c.b16 %v1046, %v1042
    %v1107 = vpack.c.b16 %v1051, %v1047
    %v1108 = vpack.c.b16 %v1052, %v1048
    %v1109 = vpack.c.b16 %v1053, %v1049
    %v1110 = vpack.c.b16 %v1054, %v1050
    %v1111 = vpack.c.b16 %v1059, %v1055
    %v1112 = vpack.c.b16 %v1060, %v1056
    %v1113 = vpack.c.b16 %v1061, %v1057
    %v1114 = vpack.c.b16 %v1062, %v1058
    %v1115 = vpack.c.b16 %v1067, %v1063
    %v1116 = vpack.c.b16 %v1068, %v1064
    %v1117 = vpack.c.b16 %v1069, %v1065
    %v1118 = vpack.c.b16 %v1070, %v1066
    %v1119 = vpack.c.b16 %v1075, %v1071
    %v1120 = vpack.c.b16 %v1076, %v1072
    %v1121 = vpack.c.b16 %v1077, %v1073
    %v1122 = vpack.c.b16 %v1078, %v1074
    %v1123 = vpack.c.b16 %v1083, %v1079
    %v1124 = vpack.c.b16 %v1084, %v1080
    %v1125 = vpack.c.b16 %v1085, %v1081
    %v1126 = vpack.c.b16 %v1086, %v1082
    %v1127 = vpack.c.b16 %v1091, %v1087
    %v1128 = vpack.c.b16 %v1092, %v1088
    %v1129 = vpack.c.b16 %v1093, %v1089
    %v1130 = vpack.c.b16 %v1094, %v1090
    %v1131 = vpack.c.b16 %v1099, %v1095
    %v1132 = vpack.c.b16 %v1100, %v1096
    %v1133 = vpack.c.b16 %v1101, %v1097
    %v1134 = vpack.c.b16 %v1102, %v1098
    %1167 = vmatprep.subr.bf16.mxu0 %v1132
    %1168 = vmatpush1.bf16.msra.mxu0 %v1131
    %1169 = vmatprep.subr.bf16.mxu0 %v1128
    %1170 = vmatpush1.bf16.msra.mxu0 %v1127
    %1171 = vmatprep.subr.bf16.mxu0 %v1124
    %1172 = vmatpush1.bf16.msra.mxu0 %v1123
    %1173 = vmatprep.subr.bf16.mxu0 %v1120
    %1174 = vmatpush1.bf16.msra.mxu0 %v1119
    %1175 = vmatprep.subr.bf16.mxu0 %v1116
    %1176 = vmatpush1.bf16.msra.mxu0 %v1115
    %1177 = vmatprep.subr.bf16.mxu0 %v1112
    %1178 = vmatpush1.bf16.msra.mxu0 %v1111
    %1179 = vmatprep.subr.bf16.mxu0 %v1108
    %1180 = vmatpush1.bf16.msra.mxu0 %v1107
    %1181 = vmatprep.subr.bf16.mxu0 %v1104
    %1182 = vmatpush1.bf16.msra.mxu0 %v1103
    %1183 = vmatprep.subr.bf16.mxu0 0
    %1184 = vmatpush2.bf16.msra.mxu0 0
    %1185 = vmatprep.subr.bf16.mxu0 0
    %1186 = vmatpush2.bf16.msra.mxu0 0
    %1187 = vmatprep.subr.bf16.mxu0 0
    %1188 = vmatpush2.bf16.msra.mxu0 0
    %1189 = vmatprep.subr.bf16.mxu0 0
    %1190 = vmatpush2.bf16.msra.mxu0 0
    %1191 = vmatprep.subr.bf16.mxu0 0
    %1192 = vmatpush2.bf16.msra.mxu0 0
    %1193 = vmatprep.subr.bf16.mxu0 0
    %1194 = vmatpush2.bf16.msra.mxu0 0
    %1195 = vmatprep.subr.bf16.mxu0 0
    %1196 = vmatpush2.bf16.msra.mxu0 0
    %1197 = vmatprep.subr.bf16.mxu0 0
    %1198 = vmatpush2.bf16.msra.mxu0 0
    %1199 = vmatprep.mubr.bf16.mxu0 0
    %1200 = vmatmul.mubr.bf16.gmra.mxu0 %v969
    %v1201 = vpop.f32.mrf.mxu0
    %v1202 = vadd.f32 0.0, %v1201
    %v1203 = vpop.f32.mrf.mxu0
    %v1204 = vadd.f32 0.0, %v1203
    %v1205 = vpop.f32.mrf.mxu0
    %v1206 = vpop.f32.mrf.mxu0
    %1207 = vdwg.mxu0
    %1208 = vmatprep.subr.bf16.mxu0 %v1134
    %1209 = vmatpush1.bf16.msra.mxu0 %v1133
    %1210 = vmatprep.subr.bf16.mxu0 %v1130
    %1211 = vmatpush1.bf16.msra.mxu0 %v1129
    %1212 = vmatprep.subr.bf16.mxu0 %v1126
    %1213 = vmatpush1.bf16.msra.mxu0 %v1125
    %1214 = vmatprep.subr.bf16.mxu0 %v1122
    %1215 = vmatpush1.bf16.msra.mxu0 %v1121
    %1216 = vmatprep.subr.bf16.mxu0 %v1118
    %1217 = vmatpush1.bf16.msra.mxu0 %v1117
    %1218 = vmatprep.subr.bf16.mxu0 %v1114
    %1219 = vmatpush1.bf16.msra.mxu0 %v1113
    %1220 = vmatprep.subr.bf16.mxu0 %v1110
    %1221 = vmatpush1.bf16.msra.mxu0 %v1109
    %1222 = vmatprep.subr.bf16.mxu0 %v1106
    %1223 = vmatpush1.bf16.msra.mxu0 %v1105
    %1224 = vmatprep.subr.bf16.mxu0 0
    %1225 = vmatpush2.bf16.msra.mxu0 0
    %1226 = vmatprep.subr.bf16.mxu0 0
    %1227 = vmatpush2.bf16.msra.mxu0 0
    %1228 = vmatprep.subr.bf16.mxu0 0
    %1229 = vmatpush2.bf16.msra.mxu0 0
    %1230 = vmatprep.subr.bf16.mxu0 0
    %1231 = vmatpush2.bf16.msra.mxu0 0
    %1232 = vmatprep.subr.bf16.mxu0 0
    %1233 = vmatpush2.bf16.msra.mxu0 0
    %1234 = vmatprep.subr.bf16.mxu0 0
    %1235 = vmatpush2.bf16.msra.mxu0 0
    %1236 = vmatprep.subr.bf16.mxu0 0
    %1237 = vmatpush2.bf16.msra.mxu0 0
    %1238 = vmatprep.subr.bf16.mxu0 0
    %1239 = vmatpush2.bf16.msra.mxu0 0
    %1240 = vmatprep.mubr.bf16.mxu0 0
    %1241 = vmatmul.mubr.bf16.gmra.mxu0 %v969
    %v1242 = vpop.f32.mrf.mxu0
    %v1243 = vadd.f32 0.0, %v1242
    %v1244 = vpop.f32.mrf.mxu0
    %v1245 = vadd.f32 0.0, %v1244
    %v1246 = vpop.f32.mrf.mxu0
    %v1247 = vpop.f32.mrf.mxu0
    %1248 = vdwg.mxu0
    %v1249 = vadd.f32 %v971, %v1202
    %v1250 = vadd.f32 %v972, %v1204
    %v1251 = vadd.f32 %v973, %v1243
    %v1252 = vadd.f32 %v974, %v1245
    %v1253 = vxor.u32 %v1249, 2147483648
    %v1254 = vxor.u32 %v1250, 2147483648
    %v1255 = vxor.u32 %v1251, 2147483648
    %v1256 = vmul.f32 %v1253, 1.442695
    %v1257 = vpow.pop %v1256
    %v1258 = vmul.f32 %v1254, 1.442695
    %v1259 = vpow.pop %v1258
    %v1260 = vmul.f32 %v1255, 1.442695
    %v1261 = vpow.pop %v1260
    %v1262 = vadd.f32 %v1257, 1.0
    %v1263 = vadd.f32 %v1259, 1.0
    %v1264 = vadd.f32 %v1261, 1.0
    %v1265 = vrcp.pop %v1262
    %v1266 = vmul.f32 1.0, %v1265
    %v1267 = vrcp.pop %v1263
    %v1268 = vmul.f32 1.0, %v1267
    %v1269 = vrcp.pop %v1264
    %v1270 = vmul.f32 1.0, %v1269
    %v1271 = vtanh.pop %v1252
    %v1272 = vmul.f32 %v1268, %v966
    %v1273 = vmul.f32 %v1266, %v1271
    %v1274 = vadd.f32 %v1272, %v1273
    %v1275 = vtanh.pop %v1274
    %v1276 = vmul.f32 %v1270, %v1275
    %v1277 = vpack.c.bf16 %v1276, %v1276
    %1278 = vst [vmem:[#allocation3 + $0x8] sm:$0xf] %v1277
    %v1279 = vld [vmem:[#allocation2 + $0x60] sm:$0xff]
    %v1280 = vld [vmem:[#allocation2 + $0x68] sm:$0xff]
    %v1281 = vld [vmem:[#allocation2 + $0x70] sm:$0xff]
    %v1282 = vld [vmem:[#allocation2 + $0x78] sm:$0xff]
    %v1283 = vld [vmem:[#allocation7] sm:$0xff]
    %v1284 = vld [vmem:[#allocation7 + $0x8] sm:$0xff]
    %v1285 = vld [vmem:[#allocation7 + $0x10] sm:$0xff]
    %v1286 = vld [vmem:[#allocation7 + $0x18] sm:$0xff]
    %v1287 = vld [vmem:[#allocation7 + $0x20] sm:$0xff]
    %v1288 = vld [vmem:[#allocation7 + $0x28] sm:$0xff]
    %v1289 = vld [vmem:[#allocation7 + $0x30] sm:$0xff]
    %v1290 = vld [vmem:[#allocation7 + $0x38] sm:$0xff]
    %v1291 = vld [vmem:[#allocation7 + $0x40] sm:$0xff]
    %v1292 = vld [vmem:[#allocation7 + $0x48] sm:$0xff]
    %v1293 = vld [vmem:[#allocation7 + $0x50] sm:$0xff]
    %v1294 = vld [vmem:[#allocation7 + $0x58] sm:$0xff]
    %v1295 = vld [vmem:[#allocation7 + $0x60] sm:$0xff]
    %v1296 = vld [vmem:[#allocation7 + $0x68] sm:$0xff]
    %v1297 = vld [vmem:[#allocation7 + $0x70] sm:$0xff]
    %v1298 = vld [vmem:[#allocation7 + $0x78] sm:$0xff]
    %v1299 = vld [vmem:[#allocation7 + $0x80] sm:$0xff]
    %v1300 = vld [vmem:[#allocation7 + $0x88] sm:$0xff]
    %v1301 = vld [vmem:[#allocation7 + $0x90] sm:$0xff]
    %v1302 = vld [vmem:[#allocation7 + $0x98] sm:$0xff]
    %v1303 = vld [vmem:[#allocation7 + $0xa0] sm:$0xff]
    %v1304 = vld [vmem:[#allocation7 + $0xa8] sm:$0xff]
    %v1305 = vld [vmem:[#allocation7 + $0xb0] sm:$0xff]
    %v1306 = vld [vmem:[#allocation7 + $0xb8] sm:$0xff]
    %v1307 = vld [vmem:[#allocation7 + $0xc0] sm:$0xff]
    %v1308 = vld [vmem:[#allocation7 + $0xc8] sm:$0xff]
    %v1309 = vld [vmem:[#allocation7 + $0xd0] sm:$0xff]
    %v1310 = vld [vmem:[#allocation7 + $0xd8] sm:$0xff]
    %v1311 = vld [vmem:[#allocation7 + $0xe0] sm:$0xff]
    %v1312 = vld [vmem:[#allocation7 + $0xe8] sm:$0xff]
    %v1313 = vld [vmem:[#allocation7 + $0xf0] sm:$0xff]
    %v1314 = vld [vmem:[#allocation7 + $0xf8] sm:$0xff]
    %v1347 = vunpack.c.l.b16 %v1283
    %v1348 = vunpack.c.h.b16 %v1283
    %v1349 = vunpack.c.l.b16 %v1284
    %v1350 = vunpack.c.h.b16 %v1284
    %v1351 = vunpack.c.l.b16 %v1285
    %v1352 = vunpack.c.h.b16 %v1285
    %v1353 = vunpack.c.l.b16 %v1286
    %v1354 = vunpack.c.h.b16 %v1286
    %v1355 = vunpack.c.l.b16 %v1287
    %v1356 = vunpack.c.h.b16 %v1287
    %v1357 = vunpack.c.l.b16 %v1288
    %v1358 = vunpack.c.h.b16 %v1288
    %v1359 = vunpack.c.l.b16 %v1289
    %v1360 = vunpack.c.h.b16 %v1289
    %v1361 = vunpack.c.l.b16 %v1290
    %v1362 = vunpack.c.h.b16 %v1290
    %v1363 = vunpack.c.l.b16 %v1291
    %v1364 = vunpack.c.h.b16 %v1291
    %v1365 = vunpack.c.l.b16 %v1292
    %v1366 = vunpack.c.h.b16 %v1292
    %v1367 = vunpack.c.l.b16 %v1293
    %v1368 = vunpack.c.h.b16 %v1293
    %v1369 = vunpack.c.l.b16 %v1294
    %v1370 = vunpack.c.h.b16 %v1294
    %v1371 = vunpack.c.l.b16 %v1295
    %v1372 = vunpack.c.h.b16 %v1295
    %v1373 = vunpack.c.l.b16 %v1296
    %v1374 = vunpack.c.h.b16 %v1296
    %v1375 = vunpack.c.l.b16 %v1297
    %v1376 = vunpack.c.h.b16 %v1297
    %v1377 = vunpack.c.l.b16 %v1298
    %v1378 = vunpack.c.h.b16 %v1298
    %v1379 = vunpack.c.l.b16 %v1299
    %v1380 = vunpack.c.h.b16 %v1299
    %v1381 = vunpack.c.l.b16 %v1300
    %v1382 = vunpack.c.h.b16 %v1300
    %v1383 = vunpack.c.l.b16 %v1301
    %v1384 = vunpack.c.h.b16 %v1301
    %v1385 = vunpack.c.l.b16 %v1302
    %v1386 = vunpack.c.h.b16 %v1302
    %v1387 = vunpack.c.l.b16 %v1303
    %v1388 = vunpack.c.h.b16 %v1303
    %v1389 = vunpack.c.l.b16 %v1304
    %v1390 = vunpack.c.h.b16 %v1304
    %v1391 = vunpack.c.l.b16 %v1305
    %v1392 = vunpack.c.h.b16 %v1305
    %v1393 = vunpack.c.l.b16 %v1306
    %v1394 = vunpack.c.h.b16 %v1306
    %v1395 = vunpack.c.l.b16 %v1307
    %v1396 = vunpack.c.h.b16 %v1307
    %v1397 = vunpack.c.l.b16 %v1308
    %v1398 = vunpack.c.h.b16 %v1308
    %v1399 = vunpack.c.l.b16 %v1309
    %v1400 = vunpack.c.h.b16 %v1309
    %v1401 = vunpack.c.l.b16 %v1310
    %v1402 = vunpack.c.h.b16 %v1310
    %v1403 = vunpack.c.l.b16 %v1311
    %v1404 = vunpack.c.h.b16 %v1311
    %v1405 = vunpack.c.l.b16 %v1312
    %v1406 = vunpack.c.h.b16 %v1312
    %v1407 = vunpack.c.l.b16 %v1313
    %v1408 = vunpack.c.h.b16 %v1313
    %v1409 = vunpack.c.l.b16 %v1314
    %v1410 = vunpack.c.h.b16 %v1314
    %v1411 = vpack.c.b16 %v1351, %v1347
    %v1412 = vpack.c.b16 %v1352, %v1348
    %v1413 = vpack.c.b16 %v1353, %v1349
    %v1414 = vpack.c.b16 %v1354, %v1350
    %v1415 = vpack.c.b16 %v1359, %v1355
    %v1416 = vpack.c.b16 %v1360, %v1356
    %v1417 = vpack.c.b16 %v1361, %v1357
    %v1418 = vpack.c.b16 %v1362, %v1358
    %v1419 = vpack.c.b16 %v1367, %v1363
    %v1420 = vpack.c.b16 %v1368, %v1364
    %v1421 = vpack.c.b16 %v1369, %v1365
    %v1422 = vpack.c.b16 %v1370, %v1366
    %v1423 = vpack.c.b16 %v1375, %v1371
    %v1424 = vpack.c.b16 %v1376, %v1372
    %v1425 = vpack.c.b16 %v1377, %v1373
    %v1426 = vpack.c.b16 %v1378, %v1374
    %v1427 = vpack.c.b16 %v1383, %v1379
    %v1428 = vpack.c.b16 %v1384, %v1380
    %v1429 = vpack.c.b16 %v1385, %v1381
    %v1430 = vpack.c.b16 %v1386, %v1382
    %v1431 = vpack.c.b16 %v1391, %v1387
    %v1432 = vpack.c.b16 %v1392, %v1388
    %v1433 = vpack.c.b16 %v1393, %v1389
    %v1434 = vpack.c.b16 %v1394, %v1390
    %v1435 = vpack.c.b16 %v1399, %v1395
    %v1436 = vpack.c.b16 %v1400, %v1396
    %v1437 = vpack.c.b16 %v1401, %v1397
    %v1438 = vpack.c.b16 %v1402, %v1398
    %v1439 = vpack.c.b16 %v1407, %v1403
    %v1440 = vpack.c.b16 %v1408, %v1404
    %v1441 = vpack.c.b16 %v1409, %v1405
    %v1442 = vpack.c.b16 %v1410, %v1406
    %1475 = vmatprep.subr.bf16.mxu0 %v1440
    %1476 = vmatpush1.bf16.msra.mxu0 %v1439
    %1477 = vmatprep.subr.bf16.mxu0 %v1436
    %1478 = vmatpush1.bf16.msra.mxu0 %v1435
    %1479 = vmatprep.subr.bf16.mxu0 %v1432
    %1480 = vmatpush1.bf16.msra.mxu0 %v1431
    %1481 = vmatprep.subr.bf16.mxu0 %v1428
    %1482 = vmatpush1.bf16.msra.mxu0 %v1427
    %1483 = vmatprep.subr.bf16.mxu0 %v1424
    %1484 = vmatpush1.bf16.msra.mxu0 %v1423
    %1485 = vmatprep.subr.bf16.mxu0 %v1420
    %1486 = vmatpush1.bf16.msra.mxu0 %v1419
    %1487 = vmatprep.subr.bf16.mxu0 %v1416
    %1488 = vmatpush1.bf16.msra.mxu0 %v1415
    %1489 = vmatprep.subr.bf16.mxu0 %v1412
    %1490 = vmatpush1.bf16.msra.mxu0 %v1411
    %1491 = vmatprep.subr.bf16.mxu0 0
    %1492 = vmatpush2.bf16.msra.mxu0 0
    %1493 = vmatprep.subr.bf16.mxu0 0
    %1494 = vmatpush2.bf16.msra.mxu0 0
    %1495 = vmatprep.subr.bf16.mxu0 0
    %1496 = vmatpush2.bf16.msra.mxu0 0
    %1497 = vmatprep.subr.bf16.mxu0 0
    %1498 = vmatpush2.bf16.msra.mxu0 0
    %1499 = vmatprep.subr.bf16.mxu0 0
    %1500 = vmatpush2.bf16.msra.mxu0 0
    %1501 = vmatprep.subr.bf16.mxu0 0
    %1502 = vmatpush2.bf16.msra.mxu0 0
    %1503 = vmatprep.subr.bf16.mxu0 0
    %1504 = vmatpush2.bf16.msra.mxu0 0
    %1505 = vmatprep.subr.bf16.mxu0 0
    %1506 = vmatpush2.bf16.msra.mxu0 0
    %1507 = vmatprep.mubr.bf16.mxu0 0
    %1508 = vmatmul.mubr.bf16.gmra.mxu0 %v1277
    %v1509 = vpop.f32.mrf.mxu0
    %v1510 = vadd.f32 0.0, %v1509
    %v1511 = vpop.f32.mrf.mxu0
    %v1512 = vadd.f32 0.0, %v1511
    %v1513 = vpop.f32.mrf.mxu0
    %v1514 = vpop.f32.mrf.mxu0
    %1515 = vdwg.mxu0
    %1516 = vmatprep.subr.bf16.mxu0 %v1442
    %1517 = vmatpush1.bf16.msra.mxu0 %v1441
    %1518 = vmatprep.subr.bf16.mxu0 %v1438
    %1519 = vmatpush1.bf16.msra.mxu0 %v1437
    %1520 = vmatprep.subr.bf16.mxu0 %v1434
    %1521 = vmatpush1.bf16.msra.mxu0 %v1433
    %1522 = vmatprep.subr.bf16.mxu0 %v1430
    %1523 = vmatpush1.bf16.msra.mxu0 %v1429
    %1524 = vmatprep.subr.bf16.mxu0 %v1426
    %1525 = vmatpush1.bf16.msra.mxu0 %v1425
    %1526 = vmatprep.subr.bf16.mxu0 %v1422
    %1527 = vmatpush1.bf16.msra.mxu0 %v1421
    %1528 = vmatprep.subr.bf16.mxu0 %v1418
    %1529 = vmatpush1.bf16.msra.mxu0 %v1417
    %1530 = vmatprep.subr.bf16.mxu0 %v1414
    %1531 = vmatpush1.bf16.msra.mxu0 %v1413
    %1532 = vmatprep.subr.bf16.mxu0 0
    %1533 = vmatpush2.bf16.msra.mxu0 0
    %1534 = vmatprep.subr.bf16.mxu0 0
    %1535 = vmatpush2.bf16.msra.mxu0 0
    %1536 = vmatprep.subr.bf16.mxu0 0
    %1537 = vmatpush2.bf16.msra.mxu0 0
    %1538 = vmatprep.subr.bf16.mxu0 0
    %1539 = vmatpush2.bf16.msra.mxu0 0
    %1540 = vmatprep.subr.bf16.mxu0 0
    %1541 = vmatpush2.bf16.msra.mxu0 0
    %1542 = vmatprep.subr.bf16.mxu0 0
    %1543 = vmatpush2.bf16.msra.mxu0 0
    %1544 = vmatprep.subr.bf16.mxu0 0
    %1545 = vmatpush2.bf16.msra.mxu0 0
    %1546 = vmatprep.subr.bf16.mxu0 0
    %1547 = vmatpush2.bf16.msra.mxu0 0
    %1548 = vmatprep.mubr.bf16.mxu0 0
    %1549 = vmatmul.mubr.bf16.gmra.mxu0 %v1277
    %v1550 = vpop.f32.mrf.mxu0
    %v1551 = vadd.f32 0.0, %v1550
    %v1552 = vpop.f32.mrf.mxu0
    %v1553 = vadd.f32 0.0, %v1552
    %v1554 = vpop.f32.mrf.mxu0
    %v1555 = vpop.f32.mrf.mxu0
    %1556 = vdwg.mxu0
    %v1557 = vadd.f32 %v1279, %v1510
    %v1558 = vadd.f32 %v1280, %v1512
    %v1559 = vadd.f32 %v1281, %v1551
    %v1560 = vadd.f32 %v1282, %v1553
    %v1561 = vxor.u32 %v1557, 2147483648
    %v1562 = vxor.u32 %v1558, 2147483648
    %v1563 = vxor.u32 %v1559, 2147483648
    %v1564 = vmul.f32 %v1561, 1.442695
    %v1565 = vpow.pop %v1564
    %v1566 = vmul.f32 %v1562, 1.442695
    %v1567 = vpow.pop %v1566
    %v1568 = vmul.f32 %v1563, 1.442695
    %v1569 = vpow.pop %v1568
    %v1570 = vadd.f32 %v1565, 1.0
    %v1571 = vadd.f32 %v1567, 1.0
    %v1572 = vadd.f32 %v1569, 1.0
    %v1573 = vrcp.pop %v1570
    %v1574 = vmul.f32 1.0, %v1573
    %v1575 = vrcp.pop %v1571
    %v1576 = vmul.f32 1.0, %v1575
    %v1577 = vrcp.pop %v1572
    %v1578 = vmul.f32 1.0, %v1577
    %v1579 = vtanh.pop %v1560
    %v1580 = vmul.f32 %v1576, %v1274
    %v1581 = vmul.f32 %v1574, %v1579
    %v1582 = vadd.f32 %v1580, %v1581
    %v1583 = vtanh.pop %v1582
    %v1584 = vmul.f32 %v1578, %v1583
    %v1585 = vpack.c.bf16 %v1584, %v1584
    %1586 = vst [vmem:[#allocation3 + $0xc] sm:$0xf] %v1585
    %v1587 = vld [vmem:[#allocation2 + $0x80] sm:$0xff]
    %v1588 = vld [vmem:[#allocation2 + $0x88] sm:$0xff]
    %v1589 = vld [vmem:[#allocation2 + $0x90] sm:$0xff]
    %v1590 = vld [vmem:[#allocation2 + $0x98] sm:$0xff]
    %v1591 = vld [vmem:[#allocation7] sm:$0xff]
    %v1592 = vld [vmem:[#allocation7 + $0x8] sm:$0xff]
    %v1593 = vld [vmem:[#allocation7 + $0x10] sm:$0xff]
    %v1594 = vld [vmem:[#allocation7 + $0x18] sm:$0xff]
    %v1595 = vld [vmem:[#allocation7 + $0x20] sm:$0xff]
    %v1596 = vld [vmem:[#allocation7 + $0x28] sm:$0xff]
    %v1597 = vld [vmem:[#allocation7 + $0x30] sm:$0xff]
    %v1598 = vld [vmem:[#allocation7 + $0x38] sm:$0xff]
    %v1599 = vld [vmem:[#allocation7 + $0x40] sm:$0xff]
    %v1600 = vld [vmem:[#allocation7 + $0x48] sm:$0xff]
    %v1601 = vld [vmem:[#allocation7 + $0x50] sm:$0xff]
    %v1602 = vld [vmem:[#allocation7 + $0x58] sm:$0xff]
    %v1603 = vld [vmem:[#allocation7 + $0x60] sm:$0xff]
    %v1604 = vld [vmem:[#allocation7 + $0x68] sm:$0xff]
    %v1605 = vld [vmem:[#allocation7 + $0x70] sm:$0xff]
    %v1606 = vld [vmem:[#allocation7 + $0x78] sm:$0xff]
    %v1607 = vld [vmem:[#allocation7 + $0x80] sm:$0xff]
    %v1608 = vld [vmem:[#allocation7 + $0x88] sm:$0xff]
    %v1609 = vld [vmem:[#allocation7 + $0x90] sm:$0xff]
    %v1610 = vld [vmem:[#allocation7 + $0x98] sm:$0xff]
    %v1611 = vld [vmem:[#allocation7 + $0xa0] sm:$0xff]
    %v1612 = vld [vmem:[#allocation7 + $0xa8] sm:$0xff]
    %v1613 = vld [vmem:[#allocation7 + $0xb0] sm:$0xff]
    %v1614 = vld [vmem:[#allocation7 + $0xb8] sm:$0xff]
    %v1615 = vld [vmem:[#allocation7 + $0xc0] sm:$0xff]
    %v1616 = vld [vmem:[#allocation7 + $0xc8] sm:$0xff]
    %v1617 = vld [vmem:[#allocation7 + $0xd0] sm:$0xff]
    %v1618 = vld [vmem:[#allocation7 + $0xd8] sm:$0xff]
    %v1619 = vld [vmem:[#allocation7 + $0xe0] sm:$0xff]
    %v1620 = vld [vmem:[#allocation7 + $0xe8] sm:$0xff]
    %v1621 = vld [vmem:[#allocation7 + $0xf0] sm:$0xff]
    %v1622 = vld [vmem:[#allocation7 + $0xf8] sm:$0xff]
    %v1655 = vunpack.c.l.b16 %v1591
    %v1656 = vunpack.c.h.b16 %v1591
    %v1657 = vunpack.c.l.b16 %v1592
    %v1658 = vunpack.c.h.b16 %v1592
    %v1659 = vunpack.c.l.b16 %v1593
    %v1660 = vunpack.c.h.b16 %v1593
    %v1661 = vunpack.c.l.b16 %v1594
    %v1662 = vunpack.c.h.b16 %v1594
    %v1663 = vunpack.c.l.b16 %v1595
    %v1664 = vunpack.c.h.b16 %v1595
    %v1665 = vunpack.c.l.b16 %v1596
    %v1666 = vunpack.c.h.b16 %v1596
    %v1667 = vunpack.c.l.b16 %v1597
    %v1668 = vunpack.c.h.b16 %v1597
    %v1669 = vunpack.c.l.b16 %v1598
    %v1670 = vunpack.c.h.b16 %v1598
    %v1671 = vunpack.c.l.b16 %v1599
    %v1672 = vunpack.c.h.b16 %v1599
    %v1673 = vunpack.c.l.b16 %v1600
    %v1674 = vunpack.c.h.b16 %v1600
    %v1675 = vunpack.c.l.b16 %v1601
    %v1676 = vunpack.c.h.b16 %v1601
    %v1677 = vunpack.c.l.b16 %v1602
    %v1678 = vunpack.c.h.b16 %v1602
    %v1679 = vunpack.c.l.b16 %v1603
    %v1680 = vunpack.c.h.b16 %v1603
    %v1681 = vunpack.c.l.b16 %v1604
    %v1682 = vunpack.c.h.b16 %v1604
    %v1683 = vunpack.c.l.b16 %v1605
    %v1684 = vunpack.c.h.b16 %v1605
    %v1685 = vunpack.c.l.b16 %v1606
    %v1686 = vunpack.c.h.b16 %v1606
    %v1687 = vunpack.c.l.b16 %v1607
    %v1688 = vunpack.c.h.b16 %v1607
    %v1689 = vunpack.c.l.b16 %v1608
    %v1690 = vunpack.c.h.b16 %v1608
    %v1691 = vunpack.c.l.b16 %v1609
    %v1692 = vunpack.c.h.b16 %v1609
    %v1693 = vunpack.c.l.b16 %v1610
    %v1694 = vunpack.c.h.b16 %v1610
    %v1695 = vunpack.c.l.b16 %v1611
    %v1696 = vunpack.c.h.b16 %v1611
    %v1697 = vunpack.c.l.b16 %v1612
    %v1698 = vunpack.c.h.b16 %v1612
    %v1699 = vunpack.c.l.b16 %v1613
    %v1700 = vunpack.c.h.b16 %v1613
    %v1701 = vunpack.c.l.b16 %v1614
    %v1702 = vunpack.c.h.b16 %v1614
    %v1703 = vunpack.c.l.b16 %v1615
    %v1704 = vunpack.c.h.b16 %v1615
    %v1705 = vunpack.c.l.b16 %v1616
    %v1706 = vunpack.c.h.b16 %v1616
    %v1707 = vunpack.c.l.b16 %v1617
    %v1708 = vunpack.c.h.b16 %v1617
    %v1709 = vunpack.c.l.b16 %v1618
    %v1710 = vunpack.c.h.b16 %v1618
    %v1711 = vunpack.c.l.b16 %v1619
    %v1712 = vunpack.c.h.b16 %v1619
    %v1713 = vunpack.c.l.b16 %v1620
    %v1714 = vunpack.c.h.b16 %v1620
    %v1715 = vunpack.c.l.b16 %v1621
    %v1716 = vunpack.c.h.b16 %v1621
    %v1717 = vunpack.c.l.b16 %v1622
    %v1718 = vunpack.c.h.b16 %v1622
    %v1719 = vpack.c.b16 %v1659, %v1655
    %v1720 = vpack.c.b16 %v1660, %v1656
    %v1721 = vpack.c.b16 %v1661, %v1657
    %v1722 = vpack.c.b16 %v1662, %v1658
    %v1723 = vpack.c.b16 %v1667, %v1663
    %v1724 = vpack.c.b16 %v1668, %v1664
    %v1725 = vpack.c.b16 %v1669, %v1665
    %v1726 = vpack.c.b16 %v1670, %v1666
    %v1727 = vpack.c.b16 %v1675, %v1671
    %v1728 = vpack.c.b16 %v1676, %v1672
    %v1729 = vpack.c.b16 %v1677, %v1673
    %v1730 = vpack.c.b16 %v1678, %v1674
    %v1731 = vpack.c.b16 %v1683, %v1679
    %v1732 = vpack.c.b16 %v1684, %v1680
    %v1733 = vpack.c.b16 %v1685, %v1681
    %v1734 = vpack.c.b16 %v1686, %v1682
    %v1735 = vpack.c.b16 %v1691, %v1687
    %v1736 = vpack.c.b16 %v1692, %v1688
    %v1737 = vpack.c.b16 %v1693, %v1689
    %v1738 = vpack.c.b16 %v1694, %v1690
    %v1739 = vpack.c.b16 %v1699, %v1695
    %v1740 = vpack.c.b16 %v1700, %v1696
    %v1741 = vpack.c.b16 %v1701, %v1697
    %v1742 = vpack.c.b16 %v1702, %v1698
    %v1743 = vpack.c.b16 %v1707, %v1703
    %v1744 = vpack.c.b16 %v1708, %v1704
    %v1745 = vpack.c.b16 %v1709, %v1705
    %v1746 = vpack.c.b16 %v1710, %v1706
    %v1747 = vpack.c.b16 %v1715, %v1711
    %v1748 = vpack.c.b16 %v1716, %v1712
    %v1749 = vpack.c.b16 %v1717, %v1713
    %v1750 = vpack.c.b16 %v1718, %v1714
    %1783 = vmatprep.subr.bf16.mxu0 %v1748
    %1784 = vmatpush1.bf16.msra.mxu0 %v1747
    %1785 = vmatprep.subr.bf16.mxu0 %v1744
    %1786 = vmatpush1.bf16.msra.mxu0 %v1743
    %1787 = vmatprep.subr.bf16.mxu0 %v1740
    %1788 = vmatpush1.bf16.msra.mxu0 %v1739
    %1789 = vmatprep.subr.bf16.mxu0 %v1736
    %1790 = vmatpush1.bf16.msra.mxu0 %v1735
    %1791 = vmatprep.subr.bf16.mxu0 %v1732
    %1792 = vmatpush1.bf16.msra.mxu0 %v1731
    %1793 = vmatprep.subr.bf16.mxu0 %v1728
    %1794 = vmatpush1.bf16.msra.mxu0 %v1727
    %1795 = vmatprep.subr.bf16.mxu0 %v1724
    %1796 = vmatpush1.bf16.msra.mxu0 %v1723
    %1797 = vmatprep.subr.bf16.mxu0 %v1720
    %1798 = vmatpush1.bf16.msra.mxu0 %v1719
    %1799 = vmatprep.subr.bf16.mxu0 0
    %1800 = vmatpush2.bf16.msra.mxu0 0
    %1801 = vmatprep.subr.bf16.mxu0 0
    %1802 = vmatpush2.bf16.msra.mxu0 0
    %1803 = vmatprep.subr.bf16.mxu0 0
    %1804 = vmatpush2.bf16.msra.mxu0 0
    %1805 = vmatprep.subr.bf16.mxu0 0
    %1806 = vmatpush2.bf16.msra.mxu0 0
    %1807 = vmatprep.subr.bf16.mxu0 0
    %1808 = vmatpush2.bf16.msra.mxu0 0
    %1809 = vmatprep.subr.bf16.mxu0 0
    %1810 = vmatpush2.bf16.msra.mxu0 0
    %1811 = vmatprep.subr.bf16.mxu0 0
    %1812 = vmatpush2.bf16.msra.mxu0 0
    %1813 = vmatprep.subr.bf16.mxu0 0
    %1814 = vmatpush2.bf16.msra.mxu0 0
    %1815 = vmatprep.mubr.bf16.mxu0 0
    %1816 = vmatmul.mubr.bf16.gmra.mxu0 %v1585
    %v1817 = vpop.f32.mrf.mxu0
    %v1818 = vadd.f32 0.0, %v1817
    %v1819 = vpop.f32.mrf.mxu0
    %v1820 = vadd.f32 0.0, %v1819
    %v1821 = vpop.f32.mrf.mxu0
    %v1822 = vpop.f32.mrf.mxu0
    %1823 = vdwg.mxu0
    %1824 = vmatprep.subr.bf16.mxu0 %v1750
    %1825 = vmatpush1.bf16.msra.mxu0 %v1749
    %1826 = vmatprep.subr.bf16.mxu0 %v1746
    %1827 = vmatpush1.bf16.msra.mxu0 %v1745
    %1828 = vmatprep.subr.bf16.mxu0 %v1742
    %1829 = vmatpush1.bf16.msra.mxu0 %v1741
    %1830 = vmatprep.subr.bf16.mxu0 %v1738
    %1831 = vmatpush1.bf16.msra.mxu0 %v1737
    %1832 = vmatprep.subr.bf16.mxu0 %v1734
    %1833 = vmatpush1.bf16.msra.mxu0 %v1733
    %1834 = vmatprep.subr.bf16.mxu0 %v1730
    %1835 = vmatpush1.bf16.msra.mxu0 %v1729
    %1836 = vmatprep.subr.bf16.mxu0 %v1726
    %1837 = vmatpush1.bf16.msra.mxu0 %v1725
    %1838 = vmatprep.subr.bf16.mxu0 %v1722
    %1839 = vmatpush1.bf16.msra.mxu0 %v1721
    %1840 = vmatprep.subr.bf16.mxu0 0
    %1841 = vmatpush2.bf16.msra.mxu0 0
    %1842 = vmatprep.subr.bf16.mxu0 0
    %1843 = vmatpush2.bf16.msra.mxu0 0
    %1844 = vmatprep.subr.bf16.mxu0 0
    %1845 = vmatpush2.bf16.msra.mxu0 0
    %1846 = vmatprep.subr.bf16.mxu0 0
    %1847 = vmatpush2.bf16.msra.mxu0 0
    %1848 = vmatprep.subr.bf16.mxu0 0
    %1849 = vmatpush2.bf16.msra.mxu0 0
    %1850 = vmatprep.subr.bf16.mxu0 0
    %1851 = vmatpush2.bf16.msra.mxu0 0
    %1852 = vmatprep.subr.bf16.mxu0 0
    %1853 = vmatpush2.bf16.msra.mxu0 0
    %1854 = vmatprep.subr.bf16.mxu0 0
    %1855 = vmatpush2.bf16.msra.mxu0 0
    %1856 = vmatprep.mubr.bf16.mxu0 0
    %1857 = vmatmul.mubr.bf16.gmra.mxu0 %v1585
    %v1858 = vpop.f32.mrf.mxu0
    %v1859 = vadd.f32 0.0, %v1858
    %v1860 = vpop.f32.mrf.mxu0
    %v1861 = vadd.f32 0.0, %v1860
    %v1862 = vpop.f32.mrf.mxu0
    %v1863 = vpop.f32.mrf.mxu0
    %1864 = vdwg.mxu0
    %v1865 = vadd.f32 %v1587, %v1818
    %v1866 = vadd.f32 %v1588, %v1820
    %v1867 = vadd.f32 %v1589, %v1859
    %v1868 = vadd.f32 %v1590, %v1861
    %v1869 = vxor.u32 %v1865, 2147483648
    %v1870 = vxor.u32 %v1866, 2147483648
    %v1871 = vxor.u32 %v1867, 2147483648
    %v1872 = vmul.f32 %v1869, 1.442695
    %v1873 = vpow.pop %v1872
    %v1874 = vmul.f32 %v1870, 1.442695
    %v1875 = vpow.pop %v1874
    %v1876 = vmul.f32 %v1871, 1.442695
    %v1877 = vpow.pop %v1876
    %v1878 = vadd.f32 %v1873, 1.0
    %v1879 = vadd.f32 %v1875, 1.0
    %v1880 = vadd.f32 %v1877, 1.0
    %v1881 = vrcp.pop %v1878
    %v1882 = vmul.f32 1.0, %v1881
    %v1883 = vrcp.pop %v1879
    %v1884 = vmul.f32 1.0, %v1883
    %v1885 = vrcp.pop %v1880
    %v1886 = vmul.f32 1.0, %v1885
    %v1887 = vtanh.pop %v1868
    %v1888 = vmul.f32 %v1884, %v1582
    %v1889 = vmul.f32 %v1882, %v1887
    %v1890 = vadd.f32 %v1888, %v1889
    %v1891 = vtanh.pop %v1890
    %v1892 = vmul.f32 %v1886, %v1891
    %v1893 = vpack.c.bf16 %v1892, %v1892
    %1894 = vst [vmem:[#allocation3 + $0x10] sm:$0xf] %v1893
    %v1895 = vld [vmem:[#allocation2 + $0xa0] sm:$0xff]
    %v1896 = vld [vmem:[#allocation2 + $0xa8] sm:$0xff]
    %v1897 = vld [vmem:[#allocation2 + $0xb0] sm:$0xff]
    %v1898 = vld [vmem:[#allocation2 + $0xb8] sm:$0xff]
    %v1899 = vld [vmem:[#allocation7] sm:$0xff]
    %v1900 = vld [vmem:[#allocation7 + $0x8] sm:$0xff]
    %v1901 = vld [vmem:[#allocation7 + $0x10] sm:$0xff]
    %v1902 = vld [vmem:[#allocation7 + $0x18] sm:$0xff]
    %v1903 = vld [vmem:[#allocation7 + $0x20] sm:$0xff]
    %v1904 = vld [vmem:[#allocation7 + $0x28] sm:$0xff]
    %v1905 = vld [vmem:[#allocation7 + $0x30] sm:$0xff]
    %v1906 = vld [vmem:[#allocation7 + $0x38] sm:$0xff]
    %v1907 = vld [vmem:[#allocation7 + $0x40] sm:$0xff]
    %v1908 = vld [vmem:[#allocation7 + $0x48] sm:$0xff]
    %v1909 = vld [vmem:[#allocation7 + $0x50] sm:$0xff]
    %v1910 = vld [vmem:[#allocation7 + $0x58] sm:$0xff]
    %v1911 = vld [vmem:[#allocation7 + $0x60] sm:$0xff]
    %v1912 = vld [vmem:[#allocation7 + $0x68] sm:$0xff]
    %v1913 = vld [vmem:[#allocation7 + $0x70] sm:$0xff]
    %v1914 = vld [vmem:[#allocation7 + $0x78] sm:$0xff]
    %v1915 = vld [vmem:[#allocation7 + $0x80] sm:$0xff]
    %v1916 = vld [vmem:[#allocation7 + $0x88] sm:$0xff]
    %v1917 = vld [vmem:[#allocation7 + $0x90] sm:$0xff]
    %v1918 = vld [vmem:[#allocation7 + $0x98] sm:$0xff]
    %v1919 = vld [vmem:[#allocation7 + $0xa0] sm:$0xff]
    %v1920 = vld [vmem:[#allocation7 + $0xa8] sm:$0xff]
    %v1921 = vld [vmem:[#allocation7 + $0xb0] sm:$0xff]
    %v1922 = vld [vmem:[#allocation7 + $0xb8] sm:$0xff]
    %v1923 = vld [vmem:[#allocation7 + $0xc0] sm:$0xff]
    %v1924 = vld [vmem:[#allocation7 + $0xc8] sm:$0xff]
    %v1925 = vld [vmem:[#allocation7 + $0xd0] sm:$0xff]
    %v1926 = vld [vmem:[#allocation7 + $0xd8] sm:$0xff]
    %v1927 = vld [vmem:[#allocation7 + $0xe0] sm:$0xff]
    %v1928 = vld [vmem:[#allocation7 + $0xe8] sm:$0xff]
    %v1929 = vld [vmem:[#allocation7 + $0xf0] sm:$0xff]
    %v1930 = vld [vmem:[#allocation7 + $0xf8] sm:$0xff]
    %v1963 = vunpack.c.l.b16 %v1899
    %v1964 = vunpack.c.h.b16 %v1899
    %v1965 = vunpack.c.l.b16 %v1900
    %v1966 = vunpack.c.h.b16 %v1900
    %v1967 = vunpack.c.l.b16 %v1901
    %v1968 = vunpack.c.h.b16 %v1901
    %v1969 = vunpack.c.l.b16 %v1902
    %v1970 = vunpack.c.h.b16 %v1902
    %v1971 = vunpack.c.l.b16 %v1903
    %v1972 = vunpack.c.h.b16 %v1903
    %v1973 = vunpack.c.l.b16 %v1904
    %v1974 = vunpack.c.h.b16 %v1904
    %v1975 = vunpack.c.l.b16 %v1905
    %v1976 = vunpack.c.h.b16 %v1905
    %v1977 = vunpack.c.l.b16 %v1906
    %v1978 = vunpack.c.h.b16 %v1906
    %v1979 = vunpack.c.l.b16 %v1907
    %v1980 = vunpack.c.h.b16 %v1907
    %v1981 = vunpack.c.l.b16 %v1908
    %v1982 = vunpack.c.h.b16 %v1908
    %v1983 = vunpack.c.l.b16 %v1909
    %v1984 = vunpack.c.h.b16 %v1909
    %v1985 = vunpack.c.l.b16 %v1910
    %v1986 = vunpack.c.h.b16 %v1910
    %v1987 = vunpack.c.l.b16 %v1911
    %v1988 = vunpack.c.h.b16 %v1911
    %v1989 = vunpack.c.l.b16 %v1912
    %v1990 = vunpack.c.h.b16 %v1912
    %v1991 = vunpack.c.l.b16 %v1913
    %v1992 = vunpack.c.h.b16 %v1913
    %v1993 = vunpack.c.l.b16 %v1914
    %v1994 = vunpack.c.h.b16 %v1914
    %v1995 = vunpack.c.l.b16 %v1915
    %v1996 = vunpack.c.h.b16 %v1915
    %v1997 = vunpack.c.l.b16 %v1916
    %v1998 = vunpack.c.h.b16 %v1916
    %v1999 = vunpack.c.l.b16 %v1917
    %v2000 = vunpack.c.h.b16 %v1917
    %v2001 = vunpack.c.l.b16 %v1918
    %v2002 = vunpack.c.h.b16 %v1918
    %v2003 = vunpack.c.l.b16 %v1919
    %v2004 = vunpack.c.h.b16 %v1919
    %v2005 = vunpack.c.l.b16 %v1920
    %v2006 = vunpack.c.h.b16 %v1920
    %v2007 = vunpack.c.l.b16 %v1921
    %v2008 = vunpack.c.h.b16 %v1921
    %v2009 = vunpack.c.l.b16 %v1922
    %v2010 = vunpack.c.h.b16 %v1922
    %v2011 = vunpack.c.l.b16 %v1923
    %v2012 = vunpack.c.h.b16 %v1923
    %v2013 = vunpack.c.l.b16 %v1924
    %v2014 = vunpack.c.h.b16 %v1924
    %v2015 = vunpack.c.l.b16 %v1925
    %v2016 = vunpack.c.h.b16 %v1925
    %v2017 = vunpack.c.l.b16 %v1926
    %v2018 = vunpack.c.h.b16 %v1926
    %v2019 = vunpack.c.l.b16 %v1927
    %v2020 = vunpack.c.h.b16 %v1927
    %v2021 = vunpack.c.l.b16 %v1928
    %v2022 = vunpack.c.h.b16 %v1928
    %v2023 = vunpack.c.l.b16 %v1929
    %v2024 = vunpack.c.h.b16 %v1929
    %v2025 = vunpack.c.l.b16 %v1930
    %v2026 = vunpack.c.h.b16 %v1930
    %v2027 = vpack.c.b16 %v1967, %v1963
    %v2028 = vpack.c.b16 %v1968, %v1964
    %v2029 = vpack.c.b16 %v1969, %v1965
    %v2030 = vpack.c.b16 %v1970, %v1966
    %v2031 = vpack.c.b16 %v1975, %v1971
    %v2032 = vpack.c.b16 %v1976, %v1972
    %v2033 = vpack.c.b16 %v1977, %v1973
    %v2034 = vpack.c.b16 %v1978, %v1974
    %v2035 = vpack.c.b16 %v1983, %v1979
    %v2036 = vpack.c.b16 %v1984, %v1980
    %v2037 = vpack.c.b16 %v1985, %v1981
    %v2038 = vpack.c.b16 %v1986, %v1982
    %v2039 = vpack.c.b16 %v1991, %v1987
    %v2040 = vpack.c.b16 %v1992, %v1988
    %v2041 = vpack.c.b16 %v1993, %v1989
    %v2042 = vpack.c.b16 %v1994, %v1990
    %v2043 = vpack.c.b16 %v1999, %v1995
    %v2044 = vpack.c.b16 %v2000, %v1996
    %v2045 = vpack.c.b16 %v2001, %v1997
    %v2046 = vpack.c.b16 %v2002, %v1998
    %v2047 = vpack.c.b16 %v2007, %v2003
    %v2048 = vpack.c.b16 %v2008, %v2004
    %v2049 = vpack.c.b16 %v2009, %v2005
    %v2050 = vpack.c.b16 %v2010, %v2006
    %v2051 = vpack.c.b16 %v2015, %v2011
    %v2052 = vpack.c.b16 %v2016, %v2012
    %v2053 = vpack.c.b16 %v2017, %v2013
    %v2054 = vpack.c.b16 %v2018, %v2014
    %v2055 = vpack.c.b16 %v2023, %v2019
    %v2056 = vpack.c.b16 %v2024, %v2020
    %v2057 = vpack.c.b16 %v2025, %v2021
    %v2058 = vpack.c.b16 %v2026, %v2022
    %2091 = vmatprep.subr.bf16.mxu0 %v2056
    %2092 = vmatpush1.bf16.msra.mxu0 %v2055
    %2093 = vmatprep.subr.bf16.mxu0 %v2052
    %2094 = vmatpush1.bf16.msra.mxu0 %v2051
    %2095 = vmatprep.subr.bf16.mxu0 %v2048
    %2096 = vmatpush1.bf16.msra.mxu0 %v2047
    %2097 = vmatprep.subr.bf16.mxu0 %v2044
    %2098 = vmatpush1.bf16.msra.mxu0 %v2043
    %2099 = vmatprep.subr.bf16.mxu0 %v2040
    %2100 = vmatpush1.bf16.msra.mxu0 %v2039
    %2101 = vmatprep.subr.bf16.mxu0 %v2036
    %2102 = vmatpush1.bf16.msra.mxu0 %v2035
    %2103 = vmatprep.subr.bf16.mxu0 %v2032
    %2104 = vmatpush1.bf16.msra.mxu0 %v2031
    %2105 = vmatprep.subr.bf16.mxu0 %v2028
    %2106 = vmatpush1.bf16.msra.mxu0 %v2027
    %2107 = vmatprep.subr.bf16.mxu0 0
    %2108 = vmatpush2.bf16.msra.mxu0 0
    %2109 = vmatprep.subr.bf16.mxu0 0
    %2110 = vmatpush2.bf16.msra.mxu0 0
    %2111 = vmatprep.subr.bf16.mxu0 0
    %2112 = vmatpush2.bf16.msra.mxu0 0
    %2113 = vmatprep.subr.bf16.mxu0 0
    %2114 = vmatpush2.bf16.msra.mxu0 0
    %2115 = vmatprep.subr.bf16.mxu0 0
    %2116 = vmatpush2.bf16.msra.mxu0 0
    %2117 = vmatprep.subr.bf16.mxu0 0
    %2118 = vmatpush2.bf16.msra.mxu0 0
    %2119 = vmatprep.subr.bf16.mxu0 0
    %2120 = vmatpush2.bf16.msra.mxu0 0
    %2121 = vmatprep.subr.bf16.mxu0 0
    %2122 = vmatpush2.bf16.msra.mxu0 0
    %2123 = vmatprep.mubr.bf16.mxu0 0
    %2124 = vmatmul.mubr.bf16.gmra.mxu0 %v1893
    %v2125 = vpop.f32.mrf.mxu0
    %v2126 = vadd.f32 0.0, %v2125
    %v2127 = vpop.f32.mrf.mxu0
    %v2128 = vadd.f32 0.0, %v2127
    %v2129 = vpop.f32.mrf.mxu0
    %v2130 = vpop.f32.mrf.mxu0
    %2131 = vdwg.mxu0
    %2132 = vmatprep.subr.bf16.mxu0 %v2058
    %2133 = vmatpush1.bf16.msra.mxu0 %v2057
    %2134 = vmatprep.subr.bf16.mxu0 %v2054
    %2135 = vmatpush1.bf16.msra.mxu0 %v2053
    %2136 = vmatprep.subr.bf16.mxu0 %v2050
    %2137 = vmatpush1.bf16.msra.mxu0 %v2049
    %2138 = vmatprep.subr.bf16.mxu0 %v2046
    %2139 = vmatpush1.bf16.msra.mxu0 %v2045
    %2140 = vmatprep.subr.bf16.mxu0 %v2042
    %2141 = vmatpush1.bf16.msra.mxu0 %v2041
    %2142 = vmatprep.subr.bf16.mxu0 %v2038
    %2143 = vmatpush1.bf16.msra.mxu0 %v2037
    %2144 = vmatprep.subr.bf16.mxu0 %v2034
    %2145 = vmatpush1.bf16.msra.mxu0 %v2033
    %2146 = vmatprep.subr.bf16.mxu0 %v2030
    %2147 = vmatpush1.bf16.msra.mxu0 %v2029
    %2148 = vmatprep.subr.bf16.mxu0 0
    %2149 = vmatpush2.bf16.msra.mxu0 0
    %2150 = vmatprep.subr.bf16.mxu0 0
    %2151 = vmatpush2.bf16.msra.mxu0 0
    %2152 = vmatprep.subr.bf16.mxu0 0
    %2153 = vmatpush2.bf16.msra.mxu0 0
    %2154 = vmatprep.subr.bf16.mxu0 0
    %2155 = vmatpush2.bf16.msra.mxu0 0
    %2156 = vmatprep.subr.bf16.mxu0 0
    %2157 = vmatpush2.bf16.msra.mxu0 0
    %2158 = vmatprep.subr.bf16.mxu0 0
    %2159 = vmatpush2.bf16.msra.mxu0 0
    %2160 = vmatprep.subr.bf16.mxu0 0
    %2161 = vmatpush2.bf16.msra.mxu0 0
    %2162 = vmatprep.subr.bf16.mxu0 0
    %2163 = vmatpush2.bf16.msra.mxu0 0
    %2164 = vmatprep.mubr.bf16.mxu0 0
    %2165 = vmatmul.mubr.bf16.gmra.mxu0 %v1893
    %v2166 = vpop.f32.mrf.mxu0
    %v2167 = vadd.f32 0.0, %v2166
    %v2168 = vpop.f32.mrf.mxu0
    %v2169 = vadd.f32 0.0, %v2168
    %v2170 = vpop.f32.mrf.mxu0
    %v2171 = vpop.f32.mrf.mxu0
    %2172 = vdwg.mxu0
    %v2173 = vadd.f32 %v1895, %v2126
    %v2174 = vadd.f32 %v1896, %v2128
    %v2175 = vadd.f32 %v1897, %v2167
    %v2176 = vadd.f32 %v1898, %v2169
    %v2177 = vxor.u32 %v2173, 2147483648
    %v2178 = vxor.u32 %v2174, 2147483648
    %v2179 = vxor.u32 %v2175, 2147483648
    %v2180 = vmul.f32 %v2177, 1.442695
    %v2181 = vpow.pop %v2180
    %v2182 = vmul.f32 %v2178, 1.442695
    %v2183 = vpow.pop %v2182
    %v2184 = vmul.f32 %v2179, 1.442695
    %v2185 = vpow.pop %v2184
    %v2186 = vadd.f32 %v2181, 1.0
    %v2187 = vadd.f32 %v2183, 1.0
    %v2188 = vadd.f32 %v2185, 1.0
    %v2189 = vrcp.pop %v2186
    %v2190 = vmul.f32 1.0, %v2189
    %v2191 = vrcp.pop %v2187
    %v2192 = vmul.f32 1.0, %v2191
    %v2193 = vrcp.pop %v2188
    %v2194 = vmul.f32 1.0, %v2193
    %v2195 = vtanh.pop %v2176
    %v2196 = vmul.f32 %v2192, %v1890
    %v2197 = vmul.f32 %v2190, %v2195
    %v2198 = vadd.f32 %v2196, %v2197
    %v2199 = vtanh.pop %v2198
    %v2200 = vmul.f32 %v2194, %v2199
    %v2201 = vpack.c.bf16 %v2200, %v2200
    %2202 = vst [vmem:[#allocation3 + $0x14] sm:$0xf] %v2201
    %v2203 = vld [vmem:[#allocation2 + $0xc0] sm:$0xff]
    %v2204 = vld [vmem:[#allocation2 + $0xc8] sm:$0xff]
    %v2205 = vld [vmem:[#allocation2 + $0xd0] sm:$0xff]
    %v2206 = vld [vmem:[#allocation2 + $0xd8] sm:$0xff]
    %v2207 = vld [vmem:[#allocation7] sm:$0xff]
    %v2208 = vld [vmem:[#allocation7 + $0x8] sm:$0xff]
    %v2209 = vld [vmem:[#allocation7 + $0x10] sm:$0xff]
    %v2210 = vld [vmem:[#allocation7 + $0x18] sm:$0xff]
    %v2211 = vld [vmem:[#allocation7 + $0x20] sm:$0xff]
    %v2212 = vld [vmem:[#allocation7 + $0x28] sm:$0xff]
    %v2213 = vld [vmem:[#allocation7 + $0x30] sm:$0xff]
    %v2214 = vld [vmem:[#allocation7 + $0x38] sm:$0xff]
    %v2215 = vld [vmem:[#allocation7 + $0x40] sm:$0xff]
    %v2216 = vld [vmem:[#allocation7 + $0x48] sm:$0xff]
    %v2217 = vld [vmem:[#allocation7 + $0x50] sm:$0xff]
    %v2218 = vld [vmem:[#allocation7 + $0x58] sm:$0xff]
    %v2219 = vld [vmem:[#allocation7 + $0x60] sm:$0xff]
    %v2220 = vld [vmem:[#allocation7 + $0x68] sm:$0xff]
    %v2221 = vld [vmem:[#allocation7 + $0x70] sm:$0xff]
    %v2222 = vld [vmem:[#allocation7 + $0x78] sm:$0xff]
    %v2223 = vld [vmem:[#allocation7 + $0x80] sm:$0xff]
    %v2224 = vld [vmem:[#allocation7 + $0x88] sm:$0xff]
    %v2225 = vld [vmem:[#allocation7 + $0x90] sm:$0xff]
    %v2226 = vld [vmem:[#allocation7 + $0x98] sm:$0xff]
    %v2227 = vld [vmem:[#allocation7 + $0xa0] sm:$0xff]
    %v2228 = vld [vmem:[#allocation7 + $0xa8] sm:$0xff]
    %v2229 = vld [vmem:[#allocation7 + $0xb0] sm:$0xff]
    %v2230 = vld [vmem:[#allocation7 + $0xb8] sm:$0xff]
    %v2231 = vld [vmem:[#allocation7 + $0xc0] sm:$0xff]
    %v2232 = vld [vmem:[#allocation7 + $0xc8] sm:$0xff]
    %v2233 = vld [vmem:[#allocation7 + $0xd0] sm:$0xff]
    %v2234 = vld [vmem:[#allocation7 + $0xd8] sm:$0xff]
    %v2235 = vld [vmem:[#allocation7 + $0xe0] sm:$0xff]
    %v2236 = vld [vmem:[#allocation7 + $0xe8] sm:$0xff]
    %v2237 = vld [vmem:[#allocation7 + $0xf0] sm:$0xff]
    %v2238 = vld [vmem:[#allocation7 + $0xf8] sm:$0xff]
    %v2271 = vunpack.c.l.b16 %v2207
    %v2272 = vunpack.c.h.b16 %v2207
    %v2273 = vunpack.c.l.b16 %v2208
    %v2274 = vunpack.c.h.b16 %v2208
    %v2275 = vunpack.c.l.b16 %v2209
    %v2276 = vunpack.c.h.b16 %v2209
    %v2277 = vunpack.c.l.b16 %v2210
    %v2278 = vunpack.c.h.b16 %v2210
    %v2279 = vunpack.c.l.b16 %v2211
    %v2280 = vunpack.c.h.b16 %v2211
    %v2281 = vunpack.c.l.b16 %v2212
    %v2282 = vunpack.c.h.b16 %v2212
    %v2283 = vunpack.c.l.b16 %v2213
    %v2284 = vunpack.c.h.b16 %v2213
    %v2285 = vunpack.c.l.b16 %v2214
    %v2286 = vunpack.c.h.b16 %v2214
    %v2287 = vunpack.c.l.b16 %v2215
    %v2288 = vunpack.c.h.b16 %v2215
    %v2289 = vunpack.c.l.b16 %v2216
    %v2290 = vunpack.c.h.b16 %v2216
    %v2291 = vunpack.c.l.b16 %v2217
    %v2292 = vunpack.c.h.b16 %v2217
    %v2293 = vunpack.c.l.b16 %v2218
    %v2294 = vunpack.c.h.b16 %v2218
    %v2295 = vunpack.c.l.b16 %v2219
    %v2296 = vunpack.c.h.b16 %v2219
    %v2297 = vunpack.c.l.b16 %v2220
    %v2298 = vunpack.c.h.b16 %v2220
    %v2299 = vunpack.c.l.b16 %v2221
    %v2300 = vunpack.c.h.b16 %v2221
    %v2301 = vunpack.c.l.b16 %v2222
    %v2302 = vunpack.c.h.b16 %v2222
    %v2303 = vunpack.c.l.b16 %v2223
    %v2304 = vunpack.c.h.b16 %v2223
    %v2305 = vunpack.c.l.b16 %v2224
    %v2306 = vunpack.c.h.b16 %v2224
    %v2307 = vunpack.c.l.b16 %v2225
    %v2308 = vunpack.c.h.b16 %v2225
    %v2309 = vunpack.c.l.b16 %v2226
    %v2310 = vunpack.c.h.b16 %v2226
    %v2311 = vunpack.c.l.b16 %v2227
    %v2312 = vunpack.c.h.b16 %v2227
    %v2313 = vunpack.c.l.b16 %v2228
    %v2314 = vunpack.c.h.b16 %v2228
    %v2315 = vunpack.c.l.b16 %v2229
    %v2316 = vunpack.c.h.b16 %v2229
    %v2317 = vunpack.c.l.b16 %v2230
    %v2318 = vunpack.c.h.b16 %v2230
    %v2319 = vunpack.c.l.b16 %v2231
    %v2320 = vunpack.c.h.b16 %v2231
    %v2321 = vunpack.c.l.b16 %v2232
    %v2322 = vunpack.c.h.b16 %v2232
    %v2323 = vunpack.c.l.b16 %v2233
    %v2324 = vunpack.c.h.b16 %v2233
    %v2325 = vunpack.c.l.b16 %v2234
    %v2326 = vunpack.c.h.b16 %v2234
    %v2327 = vunpack.c.l.b16 %v2235
    %v2328 = vunpack.c.h.b16 %v2235
    %v2329 = vunpack.c.l.b16 %v2236
    %v2330 = vunpack.c.h.b16 %v2236
    %v2331 = vunpack.c.l.b16 %v2237
    %v2332 = vunpack.c.h.b16 %v2237
    %v2333 = vunpack.c.l.b16 %v2238
    %v2334 = vunpack.c.h.b16 %v2238
    %v2335 = vpack.c.b16 %v2275, %v2271
    %v2336 = vpack.c.b16 %v2276, %v2272
    %v2337 = vpack.c.b16 %v2277, %v2273
    %v2338 = vpack.c.b16 %v2278, %v2274
    %v2339 = vpack.c.b16 %v2283, %v2279
    %v2340 = vpack.c.b16 %v2284, %v2280
    %v2341 = vpack.c.b16 %v2285, %v2281
    %v2342 = vpack.c.b16 %v2286, %v2282
    %v2343 = vpack.c.b16 %v2291, %v2287
    %v2344 = vpack.c.b16 %v2292, %v2288
    %v2345 = vpack.c.b16 %v2293, %v2289
    %v2346 = vpack.c.b16 %v2294, %v2290
    %v2347 = vpack.c.b16 %v2299, %v2295
    %v2348 = vpack.c.b16 %v2300, %v2296
    %v2349 = vpack.c.b16 %v2301, %v2297
    %v2350 = vpack.c.b16 %v2302, %v2298
    %v2351 = vpack.c.b16 %v2307, %v2303
    %v2352 = vpack.c.b16 %v2308, %v2304
    %v2353 = vpack.c.b16 %v2309, %v2305
    %v2354 = vpack.c.b16 %v2310, %v2306
    %v2355 = vpack.c.b16 %v2315, %v2311
    %v2356 = vpack.c.b16 %v2316, %v2312
    %v2357 = vpack.c.b16 %v2317, %v2313
    %v2358 = vpack.c.b16 %v2318, %v2314
    %v2359 = vpack.c.b16 %v2323, %v2319
    %v2360 = vpack.c.b16 %v2324, %v2320
    %v2361 = vpack.c.b16 %v2325, %v2321
    %v2362 = vpack.c.b16 %v2326, %v2322
    %v2363 = vpack.c.b16 %v2331, %v2327
    %v2364 = vpack.c.b16 %v2332, %v2328
    %v2365 = vpack.c.b16 %v2333, %v2329
    %v2366 = vpack.c.b16 %v2334, %v2330
    %2399 = vmatprep.subr.bf16.mxu0 %v2364
    %2400 = vmatpush1.bf16.msra.mxu0 %v2363
    %2401 = vmatprep.subr.bf16.mxu0 %v2360
    %2402 = vmatpush1.bf16.msra.mxu0 %v2359
    %2403 = vmatprep.subr.bf16.mxu0 %v2356
    %2404 = vmatpush1.bf16.msra.mxu0 %v2355
    %2405 = vmatprep.subr.bf16.mxu0 %v2352
    %2406 = vmatpush1.bf16.msra.mxu0 %v2351
    %2407 = vmatprep.subr.bf16.mxu0 %v2348
    %2408 = vmatpush1.bf16.msra.mxu0 %v2347
    %2409 = vmatprep.subr.bf16.mxu0 %v2344
    %2410 = vmatpush1.bf16.msra.mxu0 %v2343
    %2411 = vmatprep.subr.bf16.mxu0 %v2340
    %2412 = vmatpush1.bf16.msra.mxu0 %v2339
    %2413 = vmatprep.subr.bf16.mxu0 %v2336
    %2414 = vmatpush1.bf16.msra.mxu0 %v2335
    %2415 = vmatprep.subr.bf16.mxu0 0
    %2416 = vmatpush2.bf16.msra.mxu0 0
    %2417 = vmatprep.subr.bf16.mxu0 0
    %2418 = vmatpush2.bf16.msra.mxu0 0
    %2419 = vmatprep.subr.bf16.mxu0 0
    %2420 = vmatpush2.bf16.msra.mxu0 0
    %2421 = vmatprep.subr.bf16.mxu0 0
    %2422 = vmatpush2.bf16.msra.mxu0 0
    %2423 = vmatprep.subr.bf16.mxu0 0
    %2424 = vmatpush2.bf16.msra.mxu0 0
    %2425 = vmatprep.subr.bf16.mxu0 0
    %2426 = vmatpush2.bf16.msra.mxu0 0
    %2427 = vmatprep.subr.bf16.mxu0 0
    %2428 = vmatpush2.bf16.msra.mxu0 0
    %2429 = vmatprep.subr.bf16.mxu0 0
    %2430 = vmatpush2.bf16.msra.mxu0 0
    %2431 = vmatprep.mubr.bf16.mxu0 0
    %2432 = vmatmul.mubr.bf16.gmra.mxu0 %v2201
    %v2433 = vpop.f32.mrf.mxu0
    %v2434 = vadd.f32 0.0, %v2433
    %v2435 = vpop.f32.mrf.mxu0
    %v2436 = vadd.f32 0.0, %v2435
    %v2437 = vpop.f32.mrf.mxu0
    %v2438 = vpop.f32.mrf.mxu0
    %2439 = vdwg.mxu0
    %2440 = vmatprep.subr.bf16.mxu0 %v2366
    %2441 = vmatpush1.bf16.msra.mxu0 %v2365
    %2442 = vmatprep.subr.bf16.mxu0 %v2362
    %2443 = vmatpush1.bf16.msra.mxu0 %v2361
    %2444 = vmatprep.subr.bf16.mxu0 %v2358
    %2445 = vmatpush1.bf16.msra.mxu0 %v2357
    %2446 = vmatprep.subr.bf16.mxu0 %v2354
    %2447 = vmatpush1.bf16.msra.mxu0 %v2353
    %2448 = vmatprep.subr.bf16.mxu0 %v2350
    %2449 = vmatpush1.bf16.msra.mxu0 %v2349
    %2450 = vmatprep.subr.bf16.mxu0 %v2346
    %2451 = vmatpush1.bf16.msra.mxu0 %v2345
    %2452 = vmatprep.subr.bf16.mxu0 %v2342
    %2453 = vmatpush1.bf16.msra.mxu0 %v2341
    %2454 = vmatprep.subr.bf16.mxu0 %v2338
    %2455 = vmatpush1.bf16.msra.mxu0 %v2337
    %2456 = vmatprep.subr.bf16.mxu0 0
    %2457 = vmatpush2.bf16.msra.mxu0 0
    %2458 = vmatprep.subr.bf16.mxu0 0
    %2459 = vmatpush2.bf16.msra.mxu0 0
    %2460 = vmatprep.subr.bf16.mxu0 0
    %2461 = vmatpush2.bf16.msra.mxu0 0
    %2462 = vmatprep.subr.bf16.mxu0 0
    %2463 = vmatpush2.bf16.msra.mxu0 0
    %2464 = vmatprep.subr.bf16.mxu0 0
    %2465 = vmatpush2.bf16.msra.mxu0 0
    %2466 = vmatprep.subr.bf16.mxu0 0
    %2467 = vmatpush2.bf16.msra.mxu0 0
    %2468 = vmatprep.subr.bf16.mxu0 0
    %2469 = vmatpush2.bf16.msra.mxu0 0
    %2470 = vmatprep.subr.bf16.mxu0 0
    %2471 = vmatpush2.bf16.msra.mxu0 0
    %2472 = vmatprep.mubr.bf16.mxu0 0
    %2473 = vmatmul.mubr.bf16.gmra.mxu0 %v2201
    %v2474 = vpop.f32.mrf.mxu0
    %v2475 = vadd.f32 0.0, %v2474
    %v2476 = vpop.f32.mrf.mxu0
    %v2477 = vadd.f32 0.0, %v2476
    %v2478 = vpop.f32.mrf.mxu0
    %v2479 = vpop.f32.mrf.mxu0
    %2480 = vdwg.mxu0
    %v2481 = vadd.f32 %v2203, %v2434
    %v2482 = vadd.f32 %v2204, %v2436
    %v2483 = vadd.f32 %v2205, %v2475
    %v2484 = vadd.f32 %v2206, %v2477
    %v2485 = vxor.u32 %v2481, 2147483648
    %v2486 = vxor.u32 %v2482, 2147483648
    %v2487 = vxor.u32 %v2483, 2147483648
    %v2488 = vmul.f32 %v2485, 1.442695
    %v2489 = vpow.pop %v2488
    %v2490 = vmul.f32 %v2486, 1.442695
    %v2491 = vpow.pop %v2490
    %v2492 = vmul.f32 %v2487, 1.442695
    %v2493 = vpow.pop %v2492
    %v2494 = vadd.f32 %v2489, 1.0
    %v2495 = vadd.f32 %v2491, 1.0
    %v2496 = vadd.f32 %v2493, 1.0
    %v2497 = vrcp.pop %v2494
    %v2498 = vmul.f32 1.0, %v2497
    %v2499 = vrcp.pop %v2495
    %v2500 = vmul.f32 1.0, %v2499
    %v2501 = vrcp.pop %v2496
    %v2502 = vmul.f32 1.0, %v2501
    %v2503 = vtanh.pop %v2484
    %v2504 = vmul.f32 %v2500, %v2198
    %v2505 = vmul.f32 %v2498, %v2503
    %v2506 = vadd.f32 %v2504, %v2505
    %v2507 = vtanh.pop %v2506
    %v2508 = vmul.f32 %v2502, %v2507
    %v2509 = vpack.c.bf16 %v2508, %v2508
    %2510 = vst [vmem:[#allocation3 + $0x18] sm:$0xf] %v2509
    %v2511 = vld [vmem:[#allocation2 + $0xe0] sm:$0xff]
    %v2512 = vld [vmem:[#allocation2 + $0xe8] sm:$0xff]
    %v2513 = vld [vmem:[#allocation2 + $0xf0] sm:$0xff]
    %v2514 = vld [vmem:[#allocation2 + $0xf8] sm:$0xff]
    %v2515 = vld [vmem:[#allocation7] sm:$0xff]
    %v2516 = vld [vmem:[#allocation7 + $0x8] sm:$0xff]
    %v2517 = vld [vmem:[#allocation7 + $0x10] sm:$0xff]
    %v2518 = vld [vmem:[#allocation7 + $0x18] sm:$0xff]
    %v2519 = vld [vmem:[#allocation7 + $0x20] sm:$0xff]
    %v2520 = vld [vmem:[#allocation7 + $0x28] sm:$0xff]
    %v2521 = vld [vmem:[#allocation7 + $0x30] sm:$0xff]
    %v2522 = vld [vmem:[#allocation7 + $0x38] sm:$0xff]
    %v2523 = vld [vmem:[#allocation7 + $0x40] sm:$0xff]
    %v2524 = vld [vmem:[#allocation7 + $0x48] sm:$0xff]
    %v2525 = vld [vmem:[#allocation7 + $0x50] sm:$0xff]
    %v2526 = vld [vmem:[#allocation7 + $0x58] sm:$0xff]
    %v2527 = vld [vmem:[#allocation7 + $0x60] sm:$0xff]
    %v2528 = vld [vmem:[#allocation7 + $0x68] sm:$0xff]
    %v2529 = vld [vmem:[#allocation7 + $0x70] sm:$0xff]
    %v2530 = vld [vmem:[#allocation7 + $0x78] sm:$0xff]
    %v2531 = vld [vmem:[#allocation7 + $0x80] sm:$0xff]
    %v2532 = vld [vmem:[#allocation7 + $0x88] sm:$0xff]
    %v2533 = vld [vmem:[#allocation7 + $0x90] sm:$0xff]
    %v2534 = vld [vmem:[#allocation7 + $0x98] sm:$0xff]
    %v2535 = vld [vmem:[#allocation7 + $0xa0] sm:$0xff]
    %v2536 = vld [vmem:[#allocation7 + $0xa8] sm:$0xff]
    %v2537 = vld [vmem:[#allocation7 + $0xb0] sm:$0xff]
    %v2538 = vld [vmem:[#allocation7 + $0xb8] sm:$0xff]
    %v2539 = vld [vmem:[#allocation7 + $0xc0] sm:$0xff]
    %v2540 = vld [vmem:[#allocation7 + $0xc8] sm:$0xff]
    %v2541 = vld [vmem:[#allocation7 + $0xd0] sm:$0xff]
    %v2542 = vld [vmem:[#allocation7 + $0xd8] sm:$0xff]
    %v2543 = vld [vmem:[#allocation7 + $0xe0] sm:$0xff]
    %v2544 = vld [vmem:[#allocation7 + $0xe8] sm:$0xff]
    %v2545 = vld [vmem:[#allocation7 + $0xf0] sm:$0xff]
    %v2546 = vld [vmem:[#allocation7 + $0xf8] sm:$0xff]
    %v2579 = vunpack.c.l.b16 %v2515
    %v2580 = vunpack.c.h.b16 %v2515
    %v2581 = vunpack.c.l.b16 %v2516
    %v2582 = vunpack.c.h.b16 %v2516
    %v2583 = vunpack.c.l.b16 %v2517
    %v2584 = vunpack.c.h.b16 %v2517
    %v2585 = vunpack.c.l.b16 %v2518
    %v2586 = vunpack.c.h.b16 %v2518
    %v2587 = vunpack.c.l.b16 %v2519
    %v2588 = vunpack.c.h.b16 %v2519
    %v2589 = vunpack.c.l.b16 %v2520
    %v2590 = vunpack.c.h.b16 %v2520
    %v2591 = vunpack.c.l.b16 %v2521
    %v2592 = vunpack.c.h.b16 %v2521
    %v2593 = vunpack.c.l.b16 %v2522
    %v2594 = vunpack.c.h.b16 %v2522
    %v2595 = vunpack.c.l.b16 %v2523
    %v2596 = vunpack.c.h.b16 %v2523
    %v2597 = vunpack.c.l.b16 %v2524
    %v2598 = vunpack.c.h.b16 %v2524
    %v2599 = vunpack.c.l.b16 %v2525
    %v2600 = vunpack.c.h.b16 %v2525
    %v2601 = vunpack.c.l.b16 %v2526
    %v2602 = vunpack.c.h.b16 %v2526
    %v2603 = vunpack.c.l.b16 %v2527
    %v2604 = vunpack.c.h.b16 %v2527
    %v2605 = vunpack.c.l.b16 %v2528
    %v2606 = vunpack.c.h.b16 %v2528
    %v2607 = vunpack.c.l.b16 %v2529
    %v2608 = vunpack.c.h.b16 %v2529
    %v2609 = vunpack.c.l.b16 %v2530
    %v2610 = vunpack.c.h.b16 %v2530
    %v2611 = vunpack.c.l.b16 %v2531
    %v2612 = vunpack.c.h.b16 %v2531
    %v2613 = vunpack.c.l.b16 %v2532
    %v2614 = vunpack.c.h.b16 %v2532
    %v2615 = vunpack.c.l.b16 %v2533
    %v2616 = vunpack.c.h.b16 %v2533
    %v2617 = vunpack.c.l.b16 %v2534
    %v2618 = vunpack.c.h.b16 %v2534
    %v2619 = vunpack.c.l.b16 %v2535
    %v2620 = vunpack.c.h.b16 %v2535
    %v2621 = vunpack.c.l.b16 %v2536
    %v2622 = vunpack.c.h.b16 %v2536
    %v2623 = vunpack.c.l.b16 %v2537
    %v2624 = vunpack.c.h.b16 %v2537
    %v2625 = vunpack.c.l.b16 %v2538
    %v2626 = vunpack.c.h.b16 %v2538
    %v2627 = vunpack.c.l.b16 %v2539
    %v2628 = vunpack.c.h.b16 %v2539
    %v2629 = vunpack.c.l.b16 %v2540
    %v2630 = vunpack.c.h.b16 %v2540
    %v2631 = vunpack.c.l.b16 %v2541
    %v2632 = vunpack.c.h.b16 %v2541
    %v2633 = vunpack.c.l.b16 %v2542
    %v2634 = vunpack.c.h.b16 %v2542
    %v2635 = vunpack.c.l.b16 %v2543
    %v2636 = vunpack.c.h.b16 %v2543
    %v2637 = vunpack.c.l.b16 %v2544
    %v2638 = vunpack.c.h.b16 %v2544
    %v2639 = vunpack.c.l.b16 %v2545
    %v2640 = vunpack.c.h.b16 %v2545
    %v2641 = vunpack.c.l.b16 %v2546
    %v2642 = vunpack.c.h.b16 %v2546
    %v2643 = vpack.c.b16 %v2583, %v2579
    %v2644 = vpack.c.b16 %v2584, %v2580
    %v2645 = vpack.c.b16 %v2585, %v2581
    %v2646 = vpack.c.b16 %v2586, %v2582
    %v2647 = vpack.c.b16 %v2591, %v2587
    %v2648 = vpack.c.b16 %v2592, %v2588
    %v2649 = vpack.c.b16 %v2593, %v2589
    %v2650 = vpack.c.b16 %v2594, %v2590
    %v2651 = vpack.c.b16 %v2599, %v2595
    %v2652 = vpack.c.b16 %v2600, %v2596
    %v2653 = vpack.c.b16 %v2601, %v2597
    %v2654 = vpack.c.b16 %v2602, %v2598
    %v2655 = vpack.c.b16 %v2607, %v2603
    %v2656 = vpack.c.b16 %v2608, %v2604
    %v2657 = vpack.c.b16 %v2609, %v2605
    %v2658 = vpack.c.b16 %v2610, %v2606
    %v2659 = vpack.c.b16 %v2615, %v2611
    %v2660 = vpack.c.b16 %v2616, %v2612
    %v2661 = vpack.c.b16 %v2617, %v2613
    %v2662 = vpack.c.b16 %v2618, %v2614
    %v2663 = vpack.c.b16 %v2623, %v2619
    %v2664 = vpack.c.b16 %v2624, %v2620
    %v2665 = vpack.c.b16 %v2625, %v2621
    %v2666 = vpack.c.b16 %v2626, %v2622
    %v2667 = vpack.c.b16 %v2631, %v2627
    %v2668 = vpack.c.b16 %v2632, %v2628
    %v2669 = vpack.c.b16 %v2633, %v2629
    %v2670 = vpack.c.b16 %v2634, %v2630
    %v2671 = vpack.c.b16 %v2639, %v2635
    %v2672 = vpack.c.b16 %v2640, %v2636
    %v2673 = vpack.c.b16 %v2641, %v2637
    %v2674 = vpack.c.b16 %v2642, %v2638
    %2707 = vmatprep.subr.bf16.mxu0 %v2672
    %2708 = vmatpush1.bf16.msra.mxu0 %v2671
    %2709 = vmatprep.subr.bf16.mxu0 %v2668
    %2710 = vmatpush1.bf16.msra.mxu0 %v2667
    %2711 = vmatprep.subr.bf16.mxu0 %v2664
    %2712 = vmatpush1.bf16.msra.mxu0 %v2663
    %2713 = vmatprep.subr.bf16.mxu0 %v2660
    %2714 = vmatpush1.bf16.msra.mxu0 %v2659
    %2715 = vmatprep.subr.bf16.mxu0 %v2656
    %2716 = vmatpush1.bf16.msra.mxu0 %v2655
    %2717 = vmatprep.subr.bf16.mxu0 %v2652
    %2718 = vmatpush1.bf16.msra.mxu0 %v2651
    %2719 = vmatprep.subr.bf16.mxu0 %v2648
    %2720 = vmatpush1.bf16.msra.mxu0 %v2647
    %2721 = vmatprep.subr.bf16.mxu0 %v2644
    %2722 = vmatpush1.bf16.msra.mxu0 %v2643
    %2723 = vmatprep.subr.bf16.mxu0 0
    %2724 = vmatpush2.bf16.msra.mxu0 0
    %2725 = vmatprep.subr.bf16.mxu0 0
    %2726 = vmatpush2.bf16.msra.mxu0 0
    %2727 = vmatprep.subr.bf16.mxu0 0
    %2728 = vmatpush2.bf16.msra.mxu0 0
    %2729 = vmatprep.subr.bf16.mxu0 0
    %2730 = vmatpush2.bf16.msra.mxu0 0
    %2731 = vmatprep.subr.bf16.mxu0 0
    %2732 = vmatpush2.bf16.msra.mxu0 0
    %2733 = vmatprep.subr.bf16.mxu0 0
    %2734 = vmatpush2.bf16.msra.mxu0 0
    %2735 = vmatprep.subr.bf16.mxu0 0
    %2736 = vmatpush2.bf16.msra.mxu0 0
    %2737 = vmatprep.subr.bf16.mxu0 0
    %2738 = vmatpush2.bf16.msra.mxu0 0
    %2739 = vmatprep.mubr.bf16.mxu0 0
    %2740 = vmatmul.mubr.bf16.gmra.mxu0 %v2509
    %v2741 = vpop.f32.mrf.mxu0
    %v2742 = vadd.f32 0.0, %v2741
    %v2743 = vpop.f32.mrf.mxu0
    %v2744 = vadd.f32 0.0, %v2743
    %v2745 = vpop.f32.mrf.mxu0
    %v2746 = vpop.f32.mrf.mxu0
    %2747 = vdwg.mxu0
    %2748 = vmatprep.subr.bf16.mxu0 %v2674
    %2749 = vmatpush1.bf16.msra.mxu0 %v2673
    %2750 = vmatprep.subr.bf16.mxu0 %v2670
    %2751 = vmatpush1.bf16.msra.mxu0 %v2669
    %2752 = vmatprep.subr.bf16.mxu0 %v2666
    %2753 = vmatpush1.bf16.msra.mxu0 %v2665
    %2754 = vmatprep.subr.bf16.mxu0 %v2662
    %2755 = vmatpush1.bf16.msra.mxu0 %v2661
    %2756 = vmatprep.subr.bf16.mxu0 %v2658
    %2757 = vmatpush1.bf16.msra.mxu0 %v2657
    %2758 = vmatprep.subr.bf16.mxu0 %v2654
    %2759 = vmatpush1.bf16.msra.mxu0 %v2653
    %2760 = vmatprep.subr.bf16.mxu0 %v2650
    %2761 = vmatpush1.bf16.msra.mxu0 %v2649
    %2762 = vmatprep.subr.bf16.mxu0 %v2646
    %2763 = vmatpush1.bf16.msra.mxu0 %v2645
    %2764 = vmatprep.subr.bf16.mxu0 0
    %2765 = vmatpush2.bf16.msra.mxu0 0
    %2766 = vmatprep.subr.bf16.mxu0 0
    %2767 = vmatpush2.bf16.msra.mxu0 0
    %2768 = vmatprep.subr.bf16.mxu0 0
    %2769 = vmatpush2.bf16.msra.mxu0 0
    %2770 = vmatprep.subr.bf16.mxu0 0
    %2771 = vmatpush2.bf16.msra.mxu0 0
    %2772 = vmatprep.subr.bf16.mxu0 0
    %2773 = vmatpush2.bf16.msra.mxu0 0
    %2774 = vmatprep.subr.bf16.mxu0 0
    %2775 = vmatpush2.bf16.msra.mxu0 0
    %2776 = vmatprep.subr.bf16.mxu0 0
    %2777 = vmatpush2.bf16.msra.mxu0 0
    %2778 = vmatprep.subr.bf16.mxu0 0
    %2779 = vmatpush2.bf16.msra.mxu0 0
    %2780 = vmatprep.mubr.bf16.mxu0 0
    %2781 = vmatmul.mubr.bf16.gmra.mxu0 %v2509
    %v2782 = vpop.f32.mrf.mxu0
    %v2783 = vadd.f32 0.0, %v2782
    %v2784 = vpop.f32.mrf.mxu0
    %v2785 = vadd.f32 0.0, %v2784
    %v2786 = vpop.f32.mrf.mxu0
    %v2787 = vpop.f32.mrf.mxu0
    %2788 = vdwg.mxu0
    %v2789 = vadd.f32 %v2511, %v2742
    %v2790 = vadd.f32 %v2512, %v2744
    %v2791 = vadd.f32 %v2513, %v2783
    %v2792 = vadd.f32 %v2514, %v2785
    %v2793 = vxor.u32 %v2789, 2147483648
    %v2794 = vxor.u32 %v2790, 2147483648
    %v2795 = vxor.u32 %v2791, 2147483648
    %v2796 = vmul.f32 %v2793, 1.442695
    %v2797 = vpow.pop %v2796
    %v2798 = vmul.f32 %v2794, 1.442695
    %v2799 = vpow.pop %v2798
    %v2800 = vmul.f32 %v2795, 1.442695
    %v2801 = vpow.pop %v2800
    %v2802 = vadd.f32 %v2797, 1.0
    %v2803 = vadd.f32 %v2799, 1.0
    %v2804 = vadd.f32 %v2801, 1.0
    %v2805 = vrcp.pop %v2802
    %v2806 = vmul.f32 1.0, %v2805
    %v2807 = vrcp.pop %v2803
    %v2808 = vmul.f32 1.0, %v2807
    %v2809 = vrcp.pop %v2804
    %v2810 = vmul.f32 1.0, %v2809
    %v2811 = vtanh.pop %v2792
    %v2812 = vmul.f32 %v2808, %v2506
    %v2813 = vmul.f32 %v2806, %v2811
    %v2814 = vadd.f32 %v2812, %v2813
    %v2815 = vtanh.pop %v2814
    %v2816 = vmul.f32 %v2810, %v2815
    %v2817 = vpack.c.bf16 %v2816, %v2816
    %2818 = vst [vmem:[#allocation3 + $0x1c] sm:$0xf] %v2817
    %v2819 = vld [vmem:[#allocation3] sm:$0xf]
    %v2820 = vld [vmem:[#allocation3 + $0x4] sm:$0xf]
    %v2821 = vld [vmem:[#allocation3 + $0x8] sm:$0xf]
    %v2822 = vld [vmem:[#allocation3 + $0xc] sm:$0xf]
    %v2823 = vld [vmem:[#allocation3 + $0x10] sm:$0xf]
    %v2824 = vld [vmem:[#allocation3 + $0x14] sm:$0xf]
    %v2825 = vld [vmem:[#allocation3 + $0x18] sm:$0xf]
    %v2826 = vld [vmem:[#allocation3 + $0x1c] sm:$0xf]
    %v2827 = vld [vmem:[#allocation9] sm:$0xf]
    %v2828 = vld [vmem:[#allocation9 + $0x4] sm:$0xf]
    %v2829 = vld [vmem:[#allocation9 + $0x8] sm:$0xf]
    %v2830 = vld [vmem:[#allocation9 + $0xc] sm:$0xf]
    %v2831 = vld [vmem:[#allocation9 + $0x10] sm:$0xf]
    %v2832 = vld [vmem:[#allocation9 + $0x14] sm:$0xf]
    %v2833 = vld [vmem:[#allocation9 + $0x18] sm:$0xf]
    %v2834 = vld [vmem:[#allocation9 + $0x1c] sm:$0xf]
    %v2835 = vld [vmem:[#allocation9 + $0x20] sm:$0xf]
    %v2836 = vld [vmem:[#allocation9 + $0x24] sm:$0xf]
    %v2837 = vld [vmem:[#allocation9 + $0x28] sm:$0xf]
    %v2838 = vld [vmem:[#allocation9 + $0x2c] sm:$0xf]
    %v2839 = vld [vmem:[#allocation9 + $0x30] sm:$0xf]
    %v2840 = vld [vmem:[#allocation9 + $0x34] sm:$0xf]
    %v2841 = vld [vmem:[#allocation9 + $0x38] sm:$0xf]
    %v2842 = vld [vmem:[#allocation9 + $0x3c] sm:$0xf]
    %v2843 = vld [vmem:[%s5] sm:$0x1]
    %v2845 = vlaneseq
    %v2846 = vshrl.u32 %v2845, 7
    %v2847 = vsub.s32 0, %v2846
    %v2848 = vrot.slane %v2843, %v2847
    %v2858 = vunpack.c.l.b16 %v2819
    %v2859 = vunpack.c.l.b16 %v2820
    %v2860 = vunpack.c.l.b16 %v2821
    %v2861 = vunpack.c.l.b16 %v2822
    %v2862 = vunpack.c.l.b16 %v2823
    %v2863 = vunpack.c.l.b16 %v2824
    %v2864 = vunpack.c.l.b16 %v2825
    %v2865 = vunpack.c.l.b16 %v2826
    %v2866 = vpack.c.b16 %v2859, %v2858
    %v2867 = vpack.c.b16 %v2861, %v2860
    %v2868 = vpack.c.b16 %v2863, %v2862
    %v2869 = vpack.c.b16 %v2865, %v2864
    %v2890 = vunpack.c.l.b16 %v2827
    %v2891 = vunpack.c.l.b16 %v2828
    %v2892 = vunpack.c.l.b16 %v2829
    %v2893 = vunpack.c.l.b16 %v2830
    %v2894 = vunpack.c.l.b16 %v2831
    %v2895 = vunpack.c.l.b16 %v2832
    %v2896 = vunpack.c.l.b16 %v2833
    %v2897 = vunpack.c.l.b16 %v2834
    %v2898 = vunpack.c.l.b16 %v2835
    %v2899 = vunpack.c.l.b16 %v2836
    %v2900 = vunpack.c.l.b16 %v2837
    %v2901 = vunpack.c.l.b16 %v2838
    %v2902 = vunpack.c.l.b16 %v2839
    %v2903 = vunpack.c.l.b16 %v2840
    %v2904 = vunpack.c.l.b16 %v2841
    %v2905 = vunpack.c.l.b16 %v2842
    %v2906 = vpack.c.b16 %v2891, %v2890
    %v2907 = vpack.c.b16 %v2893, %v2892
    %v2908 = vpack.c.b16 %v2895, %v2894
    %v2909 = vpack.c.b16 %v2897, %v2896
    %v2910 = vpack.c.b16 %v2899, %v2898
    %v2911 = vpack.c.b16 %v2901, %v2900
    %v2912 = vpack.c.b16 %v2903, %v2902
    %v2913 = vpack.c.b16 %v2905, %v2904
    %2922 = vmatprep.subr.bf16.mxu0 0
    %2923 = vmatpush1.bf16.msra.mxu0 %v2913
    %2924 = vmatprep.subr.bf16.mxu0 0
    %2925 = vmatpush1.bf16.msra.mxu0 %v2912
    %2926 = vmatprep.subr.bf16.mxu0 0
    %2927 = vmatpush1.bf16.msra.mxu0 %v2911
    %2928 = vmatprep.subr.bf16.mxu0 0
    %2929 = vmatpush1.bf16.msra.mxu0 %v2910
    %2930 = vmatprep.subr.bf16.mxu0 0
    %2931 = vmatpush1.bf16.msra.mxu0 %v2909
    %2932 = vmatprep.subr.bf16.mxu0 0
    %2933 = vmatpush1.bf16.msra.mxu0 %v2908
    %2934 = vmatprep.subr.bf16.mxu0 0
    %2935 = vmatpush1.bf16.msra.mxu0 %v2907
    %2936 = vmatprep.subr.bf16.mxu0 0
    %2937 = vmatpush1.bf16.msra.mxu0 %v2906
    %2938 = vmatprep.subr.bf16.mxu0 0
    %2939 = vmatpush2.bf16.msra.mxu0 0
    %2940 = vmatprep.subr.bf16.mxu0 0
    %2941 = vmatpush2.bf16.msra.mxu0 0
    %2942 = vmatprep.subr.bf16.mxu0 0
    %2943 = vmatpush2.bf16.msra.mxu0 0
    %2944 = vmatprep.subr.bf16.mxu0 0
    %2945 = vmatpush2.bf16.msra.mxu0 0
    %2946 = vmatprep.subr.bf16.mxu0 0
    %2947 = vmatpush2.bf16.msra.mxu0 0
    %2948 = vmatprep.subr.bf16.mxu0 0
    %2949 = vmatpush2.bf16.msra.mxu0 0
    %2950 = vmatprep.subr.bf16.mxu0 0
    %2951 = vmatpush2.bf16.msra.mxu0 0
    %2952 = vmatprep.subr.bf16.mxu0 0
    %2953 = vmatpush2.bf16.msra.mxu0 0
    %2954 = vmatprep.mubr.bf16.mxu0 0
    %2955 = vmatmul.mubr.bf16.gmra.mxu0 %v2866
    %v2956 = vpop.f32.mrf.mxu0
    %v2957 = vadd.f32 %v2848, %v2956
    %v2958 = vpop.f32.mrf.mxu0
    %v2959 = vpop.f32.mrf.mxu0
    %v2960 = vadd.f32 %v2848, %v2959
    %v2961 = vpop.f32.mrf.mxu0
    %2962 = vmatprep.mubr.bf16.mxu0 0
    %2963 = vmatmul.mubr.bf16.gmra.mxu0 %v2867
    %v2964 = vpop.f32.mrf.mxu0
    %v2965 = vadd.f32 %v2848, %v2964
    %v2966 = vpop.f32.mrf.mxu0
    %v2967 = vpop.f32.mrf.mxu0
    %v2968 = vadd.f32 %v2848, %v2967
    %v2969 = vpop.f32.mrf.mxu0
    %2970 = vmatprep.mubr.bf16.mxu0 0
    %2971 = vmatmul.mubr.bf16.gmra.mxu0 %v2868
    %v2972 = vpop.f32.mrf.mxu0
    %v2973 = vadd.f32 %v2848, %v2972
    %v2974 = vpop.f32.mrf.mxu0
    %v2975 = vpop.f32.mrf.mxu0
    %v2976 = vadd.f32 %v2848, %v2975
    %v2977 = vpop.f32.mrf.mxu0
    %2978 = vmatprep.mubr.bf16.mxu0 0
    %2979 = vmatmul.mubr.bf16.gmra.mxu0 %v2869
    %v2980 = vpop.f32.mrf.mxu0
    %v2981 = vadd.f32 %v2848, %v2980
    %v2982 = vpop.f32.mrf.mxu0
    %v2983 = vpop.f32.mrf.mxu0
    %v2984 = vadd.f32 %v2848, %v2983
    %v2985 = vpop.f32.mrf.mxu0
    %2986 = vdwg.mxu0
    %2987 = vst [vmem:[#allocation10] sm:$0xff] %v2957
    %2988 = vst [vmem:[#allocation10 + $0x8] sm:$0xff] %v2960
    %2989 = vst [vmem:[#allocation10 + $0x10] sm:$0xff] %v2965
    %2990 = vst [vmem:[#allocation10 + $0x18] sm:$0xff] %v2968
    %2991 = vst [vmem:[#allocation10 + $0x20] sm:$0xff] %v2973
    %2992 = vst [vmem:[#allocation10 + $0x28] sm:$0xff] %v2976
    %2993 = vst [vmem:[#allocation10 + $0x30] sm:$0xff] %v2981
    %2994 = vst [vmem:[#allocation10 + $0x38] sm:$0xff] %v2984
    // Predicated region
    $region38: #{tpu_custom_call.1} parent=1 // pred_check
      _
    $region39: #{tpu_custom_call.1} parent=1 // pred_check_branch
      %2996 = sbr.rel (0) target = $region41
    $region40: #{tpu_custom_call.1} parent=1 // pred_region
      %s2998 = ssub.s32 1024, 1024
      %2999 = vsyncadd [#allocation6], %s2998
      %s3000 = sshll.u32 [#allocation10], 4
      %s3001 = int_to_ptr.vmem [resolvable:$true] %s3000
      %3006 = dma.vmem_to_hbm [thread:$0]  %s3001, 1024, %s6, [#allocation6], 128, 128, 8
    $region41: #{tpu_custom_call.1} parent=1 // pred_fallthru
      _
    // Predicated region
    $region42: #{tpu_custom_call.1} parent=1 // pred_check
      _
    $region43: #{tpu_custom_call.1} parent=1 // pred_check_branch
      %3008 = sbr.rel (0) target = $region45
    $region44: #{tpu_custom_call.1} parent=1 // pred_region
      %3009 = dma.done [#allocation6], 1024
    $region45: #{tpu_custom_call.1} parent=1 // pred_fallthru
      _
    %3010 = vsyncpa [#allocation5], 1
    %3011 = vsyncpa [#allocation8], 1
    %3012 = vsyncpa [#allocation6], 1

</llo_original>
